<compile_context>
chip_gen: v7x
topology: tpu7x:2x2x1
jax: 0.10.0
libtpu: 0.0.40
codegen_flags: <defaults>
</compile_context>

<pallas_src>
import jax
import jax.numpy as jnp
from jax import lax
from jax.experimental import pallas as pl
from jax.experimental.pallas import tpu as pltpu


def basic_block_kernel(x_ref, w1_ref, b1_ref, w2_ref, b2_ref, o_ref, s_ref):
    # x_ref:  (1, H, W, C)      input tile (one image per grid step), bf16
    # w1_ref: (C, C)            1x1-conv weight, BN1 scale folded, bf16
    # b1_ref: (1, C)            folded BN1 bias, f32
    # w2_ref: (3, 3*C, C)       3x3-conv weight, dh-major / (dw, cin)-packed K,
    #                           BN2 scale folded, bf16
    # b2_ref: (1, C)            folded BN2 bias, f32
    # o_ref:  (1, H, W, C)      output tile, bf16
    # s_ref:  (H+2, W, 3*C)     VMEM scratch: zero-padded post-conv1 activation,
    #                           K-packed over the 3 W-taps, bf16
    _, H, W, C = x_ref.shape
    HW = H * W
    C3 = 3 * C
    ROWS = 8 if (H >= 8 and H % 8 == 0) else H      # output rows per chunk
    n_chunks = H // ROWS

    # --- conv1x1 + BN1 (scale pre-folded) + ReLU: one MXU dot over all pixels ---
    xb = x_ref[0].reshape(HW, C)                     # bf16
    t = jnp.dot(xb, w1_ref[...], preferred_element_type=jnp.float32)
    t = jnp.maximum(t + b1_ref[...], 0.0)
    t = t.astype(jnp.bfloat16).reshape(H, W, C)      # single f32->bf16 cast

    # --- build the zero-padded, K-packed activation scratch ---
    # s[i, w, dw*C:(dw+1)*C] = t_pad[i, w+dw, :] with t_pad = t 1-padded in H,W.
    # Halo regions re-zeroed every step (megacore-safe; the interior is fully
    # rewritten each step).  Only the two shifted slabs use sublane-offset
    # stores, and only once per step (the tap-loop reads below are aligned).
    s_ref[0] = jnp.zeros((W, C3), jnp.bfloat16)                       # top row
    s_ref[H + 1] = jnp.zeros((W, C3), jnp.bfloat16)                   # bottom row
    s_ref[1:H + 1, 0:1, 0:C] = jnp.zeros((H, 1, C), jnp.bfloat16)     # left halo (dw=0)
    s_ref[1:H + 1, W - 1:W, 2 * C:C3] = jnp.zeros((H, 1, C), jnp.bfloat16)  # right halo (dw=2)
    s_ref[1:H + 1, 1:W, 0:C] = t[:, :W - 1, :]       # dw = 0 tap (reads col w-1)
    s_ref[1:H + 1, :, C:2 * C] = t                   # dw = 1 tap (reads col w)
    s_ref[1:H + 1, 0:W - 1, 2 * C:C3] = t[:, 1:, :]  # dw = 2 tap (reads col w+1)

    b2 = b2_ref[...]                                  # (1, C) f32

    # --- conv3x3 (padding=1, stride=1) + BN2 bias + residual + ReLU,
    #     chunked over output rows to bound the f32 accumulator live range ---
    def chunk_body(m, carry):
        r0 = pl.multiple_of(m * ROWS, ROWS)
        acc = jnp.zeros((ROWS * W, C), jnp.float32)
        for dh in range(3):
            # Contiguous leading-dim slice; reshape is layout-preserving.
            win = s_ref[pl.ds(r0 + dh, ROWS)].reshape(ROWS * W, C3)
            acc = acc + jnp.dot(win, w2_ref[dh],
                                preferred_element_type=jnp.float32)
        res = x_ref[0, pl.ds(r0, ROWS)].reshape(ROWS * W, C).astype(jnp.float32)
        out = jnp.maximum(acc + b2 + res, 0.0)
        o_ref[0, pl.ds(r0, ROWS)] = out.reshape(ROWS, W, C).astype(o_ref.dtype)
        return carry

    lax.fori_loop(0, n_chunks, chunk_body, 0, unroll=True)


def fold_bn(gamma, beta, mean, var, eps=1e-5):
    scale = gamma / jnp.sqrt(var + eps)
    bias = beta - mean * scale
    return scale, bias


@jax.jit
def basic_block_pallas(x_nchw, w1_oihw, w2_oihw,
                       g1, b1, m1, v1, g2, b2, m2, v2):
    N, C, H, W = x_nchw.shape
    P = w1_oihw.shape[0]
    # Identity residual requires stride == 1, downsample is None, planes == inplanes.
    assert P == C and w1_oihw.shape[1] == C and w2_oihw.shape == (P, P, 3, 3)

    # Compact-C bf16 activation I/O (no channel padding, no f32 through HBM).
    x_nhwc = jnp.transpose(x_nchw, (0, 2, 3, 1)).astype(jnp.bfloat16)

    s1, sh1 = fold_bn(g1, b1, m1, v1)
    s2, sh2 = fold_bn(g2, b2, m2, v2)

    # conv1x1 as a (C, P) matmul; BN1 scale folded into the output columns.
    w1_mat = (w1_oihw[:, :, 0, 0] * s1[:, None]).T.astype(jnp.bfloat16)      # (C, P)

    # conv3x3 weight packed as (dh, dw*C + cin, cout); BN2 scale folded in.
    w2_pk = (jnp.transpose(w2_oihw, (2, 3, 1, 0)) * s2[None, None, None, :]
             ).reshape(3, 3 * C, P).astype(jnp.bfloat16)                     # (3, 3C, P)

    b1_vec = sh1.reshape(1, P).astype(jnp.float32)
    b2_vec = sh2.reshape(1, P).astype(jnp.float32)

    out_nhwc = pl.pallas_call(
        basic_block_kernel,
        out_shape=jax.ShapeDtypeStruct((N, H, W, P), jnp.bfloat16),
        grid=(N,),
        in_specs=[
            pl.BlockSpec((1, H, W, C), lambda n: (n, 0, 0, 0)),   # x
            pl.BlockSpec((C, P), lambda n: (0, 0)),               # w1 (constant)
            pl.BlockSpec((1, P), lambda n: (0, 0)),               # b1 (constant)
            pl.BlockSpec((3, 3 * C, P), lambda n: (0, 0, 0)),     # w2 (constant)
            pl.BlockSpec((1, P), lambda n: (0, 0)),               # b2 (constant)
        ],
        out_specs=pl.BlockSpec((1, H, W, P), lambda n: (n, 0, 0, 0)),
        scratch_shapes=[pltpu.VMEM((H + 2, W, 3 * C), jnp.bfloat16)],
        compiler_params=pltpu.CompilerParams(
            dimension_semantics=("parallel",)),
    )(x_nhwc, w1_mat, b1_vec, w2_pk, b2_vec)

    # Back to NCHW, f32 for the caller.
    return jnp.transpose(out_nhwc.astype(jnp.float32), (0, 3, 1, 2))


def basic_block_reference(x_nchw, w1_oihw, w2_oihw,
                          g1, b1, m1, v1, g2, b2, m2, v2):
    def bn(y, g, b, m, v, eps=1e-5):
        s = g / jnp.sqrt(v + eps)
        sh = b - m * s
        return y * s.reshape(1, -1, 1, 1) + sh.reshape(1, -1, 1, 1)

    dn = ('NCHW', 'OIHW', 'NCHW')
    y = lax.conv_general_dilated(x_nchw, w1_oihw, (1, 1), 'VALID',
                                 dimension_numbers=dn)
    y = jnp.maximum(bn(y, g1, b1, m1, v1), 0.0)
    y = lax.conv_general_dilated(y, w2_oihw, (1, 1), ((1, 1), (1, 1)),
                                 dimension_numbers=dn)
    y = bn(y, g2, b2, m2, v2)
    return jnp.maximum(y + x_nchw, 0.0)


if __name__ == "__main__":
    # Small shapes: batch=2, inplanes=planes=32, spatial=16x16, stride=1.
    N, C, H, W = 2, 32, 16, 16
    P = C  # planes == inplanes -> identity residual is valid (downsample=None)

    key = jax.random.PRNGKey(0)
    keys = jax.random.split(key, 12)
    x = jax.random.normal(keys[0], (N, C, H, W), jnp.float32)

    # Deterministic parameter init (shapes from BasicBlock.__init__).
    w1 = jax.random.normal(keys[1], (P, C, 1, 1), jnp.float32) * 0.1
    w2 = jax.random.normal(keys[2], (P, P, 3, 3), jnp.float32) * 0.05
    g1 = jax.random.normal(keys[3], (P,), jnp.float32) * 0.1 + 1.0
    b1 = jax.random.normal(keys[4], (P,), jnp.float32) * 0.1
    m1 = jax.random.normal(keys[5], (P,), jnp.float32) * 0.1
    v1 = jnp.abs(jax.random.normal(keys[6], (P,), jnp.float32)) * 0.5 + 0.5
    g2 = jax.random.normal(keys[7], (P,), jnp.float32) * 0.1 + 1.0
    b2 = jax.random.normal(keys[8], (P,), jnp.float32) * 0.1
    m2 = jax.random.normal(keys[9], (P,), jnp.float32) * 0.1
    v2 = jnp.abs(jax.random.normal(keys[10], (P,), jnp.float32)) * 0.5 + 0.5

    out = basic_block_pallas(x, w1, w2, g1, b1, m1, v1, g2, b2, m2, v2)
    out = jax.block_until_ready(out)

    ref = basic_block_reference(x, w1, w2, g1, b1, m1, v1, g2, b2, m2, v2)
    assert out.shape == (N, P, H, W)
    # bf16 activations (I/O + MXU operands) -> looser tolerance than pure f32.
    assert jnp.allclose(out, ref, atol=5e-2, rtol=5e-2), "mismatch vs reference"

    print("KERNEL_OK")
</pallas_src>

<mosaic_0001>
module attributes {stable_mosaic.version = 11 : i64} {
  func.func @basic_block_kernel(%arg0: i32, %arg1: memref<1x16x16x32xbf16, #tpu.memory_space<vmem>>, %arg2: memref<32x32xbf16, #tpu.memory_space<vmem>>, %arg3: memref<1x32xf32, #tpu.memory_space<vmem>>, %arg4: memref<3x96x32xbf16, #tpu.memory_space<vmem>>, %arg5: memref<1x32xf32, #tpu.memory_space<vmem>>, %arg6: memref<1x16x16x32xbf16, #tpu.memory_space<vmem>>, %arg7: memref<18x16x96xbf16, #tpu.memory_space<vmem>>) attributes {dimension_semantics = [#tpu.dimension_semantics<parallel>], iteration_bounds = array<i64: 2>, scalar_prefetch = 0 : i64, scratch_operands = 1 : i64, tpu.core_type = #tpu.core_type<tc>, window_params = [{transform_indices = @transform_0, window_bounds = array<i64: 1, 16, 16, 32>}, {pipeline_mode = #tpu.pipeline_mode<synchronous>, transform_indices = @transform_1, window_bounds = array<i64: 32, 32>}, {pipeline_mode = #tpu.pipeline_mode<synchronous>, transform_indices = @transform_2, window_bounds = array<i64: 1, 32>}, {pipeline_mode = #tpu.pipeline_mode<synchronous>, transform_indices = @transform_3, window_bounds = array<i64: 3, 96, 32>}, {pipeline_mode = #tpu.pipeline_mode<synchronous>, transform_indices = @transform_4, window_bounds = array<i64: 1, 32>}, {transform_indices = @transform_5, window_bounds = array<i64: 1, 16, 16, 32>}]} {
    %c0 = arith.constant 0 : index
    %c0_0 = arith.constant 0 : index
    %c0_1 = arith.constant 0 : index
    %c0_2 = arith.constant 0 : index
    %0 = vector.load %arg1[%c0, %c0_0, %c0_1, %c0_2] : memref<1x16x16x32xbf16, #tpu.memory_space<vmem>>, vector<1x16x16x32xbf16>
    %1 = vector.shape_cast %0 : vector<1x16x16x32xbf16> to vector<16x16x32xbf16>
    %2 = vector.shape_cast %1 : vector<16x16x32xbf16> to vector<256x32xbf16>
    %c0_3 = arith.constant 0 : index
    %c0_4 = arith.constant 0 : index
    %3 = vector.load %arg2[%c0_3, %c0_4] : memref<32x32xbf16, #tpu.memory_space<vmem>>, vector<32x32xbf16>
    %cst = arith.constant dense<0.000000e+00> : vector<256x32xf32>
    %4 = tpu.matmul %2, %3, %cst {dimension_numbers = #tpu.dot_dimension_numbers<[1], [0], [0], [1], [0, 0, 1, 1], [], []>} : vector<256x32xbf16>, vector<32x32xbf16>, vector<256x32xf32> -> vector<256x32xf32>
    %c0_5 = arith.constant 0 : index
    %c0_6 = arith.constant 0 : index
    %5 = vector.load %arg3[%c0_5, %c0_6] : memref<1x32xf32, #tpu.memory_space<vmem>>, vector<1x32xf32>
    %6 = vector.broadcast %5 : vector<1x32xf32> to vector<256x32xf32>
    %7 = arith.addf %4, %6 : vector<256x32xf32>
    %cst_7 = arith.constant 0.000000e+00 : f32
    %8 = vector.broadcast %cst_7 : f32 to vector<256x32xf32>
    %9 = arith.maximumf %7, %8 : vector<256x32xf32>
    %10 = arith.truncf %9 : vector<256x32xf32> to vector<256x32xbf16>
    %11 = vector.shape_cast %10 : vector<256x32xbf16> to vector<16x16x32xbf16>
    %cst_8 = arith.constant 0.000000e+00 : bf16
    %12 = vector.broadcast %cst_8 : bf16 to vector<16x96xbf16>
    %c0_9 = arith.constant 0 : index
    %c0_10 = arith.constant 0 : index
    %c0_11 = arith.constant 0 : index
    %13 = vector.load %arg7[%c0_9, %c0_10, %c0_11] : memref<18x16x96xbf16, #tpu.memory_space<vmem>>, vector<1x16x96xbf16>
    %14 = vector.shape_cast %13 : vector<1x16x96xbf16> to vector<16x96xbf16>
    %15 = vector.shape_cast %12 : vector<16x96xbf16> to vector<1x16x96xbf16>
    tpu.vector_store %arg7[%c0_9, %c0_10, %c0_11], %15 {strides = array<i32>} : memref<18x16x96xbf16, #tpu.memory_space<vmem>>, vector<1x16x96xbf16>,
    %cst_12 = arith.constant 0.000000e+00 : bf16
    %16 = vector.broadcast %cst_12 : bf16 to vector<16x96xbf16>
    %c17 = arith.constant 17 : index
    %c0_13 = arith.constant 0 : index
    %c0_14 = arith.constant 0 : index
    %17 = vector.load %arg7[%c17, %c0_13, %c0_14] : memref<18x16x96xbf16, #tpu.memory_space<vmem>>, vector<1x16x96xbf16>
    %18 = vector.shape_cast %17 : vector<1x16x96xbf16> to vector<16x96xbf16>
    %19 = vector.shape_cast %16 : vector<16x96xbf16> to vector<1x16x96xbf16>
    tpu.vector_store %arg7[%c17, %c0_13, %c0_14], %19 {strides = array<i32>} : memref<18x16x96xbf16, #tpu.memory_space<vmem>>, vector<1x16x96xbf16>,
    %cst_15 = arith.constant 0.000000e+00 : bf16
    %20 = vector.broadcast %cst_15 : bf16 to vector<16x1x32xbf16>
    %c1 = arith.constant 1 : index
    %c0_16 = arith.constant 0 : index
    %c0_17 = arith.constant 0 : index
    %21 = vector.load %arg7[%c1, %c0_16, %c0_17] : memref<18x16x96xbf16, #tpu.memory_space<vmem>>, vector<16x1x32xbf16>
    tpu.vector_store %arg7[%c1, %c0_16, %c0_17], %20 {strides = array<i32>} : memref<18x16x96xbf16, #tpu.memory_space<vmem>>, vector<16x1x32xbf16>,
    %cst_18 = arith.constant 0.000000e+00 : bf16
    %22 = vector.broadcast %cst_18 : bf16 to vector<16x1x32xbf16>
    %c1_19 = arith.constant 1 : index
    %c15 = arith.constant 15 : index
    %c64 = arith.constant 64 : index
    %23 = vector.load %arg7[%c1_19, %c15, %c64] : memref<18x16x96xbf16, #tpu.memory_space<vmem>>, vector<16x1x32xbf16>
    tpu.vector_store %arg7[%c1_19, %c15, %c64], %22 {strides = array<i32>} : memref<18x16x96xbf16, #tpu.memory_space<vmem>>, vector<16x1x32xbf16>,
    %24 = vector.extract_strided_slice %11 {offsets = [0, 0, 0], sizes = [16, 15, 32], strides = [1, 1, 1]} : vector<16x16x32xbf16> to vector<16x15x32xbf16>
    %c1_20 = arith.constant 1 : index
    %c1_21 = arith.constant 1 : index
    %c0_22 = arith.constant 0 : index
    %25 = vector.load %arg7[%c1_20, %c1_21, %c0_22] : memref<18x16x96xbf16, #tpu.memory_space<vmem>>, vector<16x15x32xbf16>
    tpu.vector_store %arg7[%c1_20, %c1_21, %c0_22], %24 {strides = array<i32>} : memref<18x16x96xbf16, #tpu.memory_space<vmem>>, vector<16x15x32xbf16>,
    %c1_23 = arith.constant 1 : index
    %c0_24 = arith.constant 0 : index
    %c32 = arith.constant 32 : index
    %26 = vector.load %arg7[%c1_23, %c0_24, %c32] : memref<18x16x96xbf16, #tpu.memory_space<vmem>>, vector<16x16x32xbf16>
    tpu.vector_store %arg7[%c1_23, %c0_24, %c32], %11 {strides = array<i32>} : memref<18x16x96xbf16, #tpu.memory_space<vmem>>, vector<16x16x32xbf16>,
    %27 = vector.extract_strided_slice %11 {offsets = [0, 1, 0], sizes = [16, 15, 32], strides = [1, 1, 1]} : vector<16x16x32xbf16> to vector<16x15x32xbf16>
    %c1_25 = arith.constant 1 : index
    %c0_26 = arith.constant 0 : index
    %c64_27 = arith.constant 64 : index
    %28 = vector.load %arg7[%c1_25, %c0_26, %c64_27] : memref<18x16x96xbf16, #tpu.memory_space<vmem>>, vector<16x15x32xbf16>
    tpu.vector_store %arg7[%c1_25, %c0_26, %c64_27], %27 {strides = array<i32>} : memref<18x16x96xbf16, #tpu.memory_space<vmem>>, vector<16x15x32xbf16>,
    %c0_28 = arith.constant 0 : index
    %c0_29 = arith.constant 0 : index
    %29 = vector.load %arg5[%c0_28, %c0_29] : memref<1x32xf32, #tpu.memory_space<vmem>>, vector<1x32xf32>
    %c0_i32 = arith.constant 0 : i32
    %c8_i32 = arith.constant 8 : i32
    %30 = arith.muli %c0_i32, %c8_i32 : i32
    %31 = tpu.assume_multiple %30, 8 : i32
    %cst_30 = arith.constant 0.000000e+00 : f32
    %32 = vector.broadcast %cst_30 : f32 to vector<128x32xf32>
    %c0_i32_31 = arith.constant 0 : i32
    %33 = arith.addi %31, %c0_i32_31 : i32
    %34 = arith.index_cast %33 : i32 to index
    %c0_32 = arith.constant 0 : index
    %c0_33 = arith.constant 0 : index
    %35 = vector.load %arg7[%34, %c0_32, %c0_33] : memref<18x16x96xbf16, #tpu.memory_space<vmem>>, vector<8x16x96xbf16>
    %36 = vector.shape_cast %35 : vector<8x16x96xbf16> to vector<128x96xbf16>
    %c0_34 = arith.constant 0 : index
    %c0_35 = arith.constant 0 : index
    %c0_36 = arith.constant 0 : index
    %37 = vector.load %arg4[%c0_34, %c0_35, %c0_36] : memref<3x96x32xbf16, #tpu.memory_space<vmem>>, vector<1x96x32xbf16>
    %38 = vector.shape_cast %37 : vector<1x96x32xbf16> to vector<96x32xbf16>
    %cst_37 = arith.constant dense<0.000000e+00> : vector<128x32xf32>
    %39 = tpu.matmul %36, %38, %cst_37 {dimension_numbers = #tpu.dot_dimension_numbers<[1], [0], [0], [1], [0, 0, 1, 1], [], []>} : vector<128x96xbf16>, vector<96x32xbf16>, vector<128x32xf32> -> vector<128x32xf32>
    %40 = arith.addf %32, %39 : vector<128x32xf32>
    %c1_i32 = arith.constant 1 : i32
    %41 = arith.addi %31, %c1_i32 : i32
    %42 = arith.index_cast %41 : i32 to index
    %c0_38 = arith.constant 0 : index
    %c0_39 = arith.constant 0 : index
    %43 = vector.load %arg7[%42, %c0_38, %c0_39] : memref<18x16x96xbf16, #tpu.memory_space<vmem>>, vector<8x16x96xbf16>
    %44 = vector.shape_cast %43 : vector<8x16x96xbf16> to vector<128x96xbf16>
    %c1_40 = arith.constant 1 : index
    %c0_41 = arith.constant 0 : index
    %c0_42 = arith.constant 0 : index
    %45 = vector.load %arg4[%c1_40, %c0_41, %c0_42] : memref<3x96x32xbf16, #tpu.memory_space<vmem>>, vector<1x96x32xbf16>
    %46 = vector.shape_cast %45 : vector<1x96x32xbf16> to vector<96x32xbf16>
    %cst_43 = arith.constant dense<0.000000e+00> : vector<128x32xf32>
    %47 = tpu.matmul %44, %46, %cst_43 {dimension_numbers = #tpu.dot_dimension_numbers<[1], [0], [0], [1], [0, 0, 1, 1], [], []>} : vector<128x96xbf16>, vector<96x32xbf16>, vector<128x32xf32> -> vector<128x32xf32>
    %48 = arith.addf %40, %47 : vector<128x32xf32>
    %c2_i32 = arith.constant 2 : i32
    %49 = arith.addi %31, %c2_i32 : i32
    %50 = arith.index_cast %49 : i32 to index
    %c0_44 = arith.constant 0 : index
    %c0_45 = arith.constant 0 : index
    %51 = vector.load %arg7[%50, %c0_44, %c0_45] : memref<18x16x96xbf16, #tpu.memory_space<vmem>>, vector<8x16x96xbf16>
    %52 = vector.shape_cast %51 : vector<8x16x96xbf16> to vector<128x96xbf16>
    %c2 = arith.constant 2 : index
    %c0_46 = arith.constant 0 : index
    %c0_47 = arith.constant 0 : index
    %53 = vector.load %arg4[%c2, %c0_46, %c0_47] : memref<3x96x32xbf16, #tpu.memory_space<vmem>>, vector<1x96x32xbf16>
    %54 = vector.shape_cast %53 : vector<1x96x32xbf16> to vector<96x32xbf16>
    %cst_48 = arith.constant dense<0.000000e+00> : vector<128x32xf32>
    %55 = tpu.matmul %52, %54, %cst_48 {dimension_numbers = #tpu.dot_dimension_numbers<[1], [0], [0], [1], [0, 0, 1, 1], [], []>} : vector<128x96xbf16>, vector<96x32xbf16>, vector<128x32xf32> -> vector<128x32xf32>
    %56 = arith.addf %48, %55 : vector<128x32xf32>
    %c0_49 = arith.constant 0 : index
    %57 = arith.index_cast %31 : i32 to index
    %c0_50 = arith.constant 0 : index
    %c0_51 = arith.constant 0 : index
    %58 = vector.load %arg1[%c0_49, %57, %c0_50, %c0_51] : memref<1x16x16x32xbf16, #tpu.memory_space<vmem>>, vector<1x8x16x32xbf16>
    %59 = vector.shape_cast %58 : vector<1x8x16x32xbf16> to vector<8x16x32xbf16>
    %60 = vector.shape_cast %59 : vector<8x16x32xbf16> to vector<128x32xbf16>
    %61 = arith.extf %60 : vector<128x32xbf16> to vector<128x32xf32>
    %62 = vector.broadcast %29 : vector<1x32xf32> to vector<128x32xf32>
    %63 = arith.addf %56, %62 : vector<128x32xf32>
    %64 = arith.addf %63, %61 : vector<128x32xf32>
    %cst_52 = arith.constant 0.000000e+00 : f32
    %65 = vector.broadcast %cst_52 : f32 to vector<128x32xf32>
    %66 = arith.maximumf %64, %65 : vector<128x32xf32>
    %67 = vector.shape_cast %66 : vector<128x32xf32> to vector<8x16x32xf32>
    %68 = arith.truncf %67 : vector<8x16x32xf32> to vector<8x16x32xbf16>
    %c0_53 = arith.constant 0 : index
    %69 = arith.index_cast %31 : i32 to index
    %c0_54 = arith.constant 0 : index
    %c0_55 = arith.constant 0 : index
    %70 = vector.load %arg6[%c0_53, %69, %c0_54, %c0_55] : memref<1x16x16x32xbf16, #tpu.memory_space<vmem>>, vector<1x8x16x32xbf16>
    %71 = vector.shape_cast %70 : vector<1x8x16x32xbf16> to vector<8x16x32xbf16>
    %72 = vector.shape_cast %68 : vector<8x16x32xbf16> to vector<1x8x16x32xbf16>
    tpu.vector_store %arg6[%c0_53, %69, %c0_54, %c0_55], %72 {strides = array<i32>} : memref<1x16x16x32xbf16, #tpu.memory_space<vmem>>, vector<1x8x16x32xbf16>,
    %c1_i32_56 = arith.constant 1 : i32
    %c8_i32_57 = arith.constant 8 : i32
    %73 = arith.muli %c1_i32_56, %c8_i32_57 : i32
    %74 = tpu.assume_multiple %73, 8 : i32
    %cst_58 = arith.constant 0.000000e+00 : f32
    %75 = vector.broadcast %cst_58 : f32 to vector<128x32xf32>
    %c0_i32_59 = arith.constant 0 : i32
    %76 = arith.addi %74, %c0_i32_59 : i32
    %77 = arith.index_cast %76 : i32 to index
    %c0_60 = arith.constant 0 : index
    %c0_61 = arith.constant 0 : index
    %78 = vector.load %arg7[%77, %c0_60, %c0_61] : memref<18x16x96xbf16, #tpu.memory_space<vmem>>, vector<8x16x96xbf16>
    %79 = vector.shape_cast %78 : vector<8x16x96xbf16> to vector<128x96xbf16>
    %c0_62 = arith.constant 0 : index
    %c0_63 = arith.constant 0 : index
    %c0_64 = arith.constant 0 : index
    %80 = vector.load %arg4[%c0_62, %c0_63, %c0_64] : memref<3x96x32xbf16, #tpu.memory_space<vmem>>, vector<1x96x32xbf16>
    %81 = vector.shape_cast %80 : vector<1x96x32xbf16> to vector<96x32xbf16>
    %cst_65 = arith.constant dense<0.000000e+00> : vector<128x32xf32>
    %82 = tpu.matmul %79, %81, %cst_65 {dimension_numbers = #tpu.dot_dimension_numbers<[1], [0], [0], [1], [0, 0, 1, 1], [], []>} : vector<128x96xbf16>, vector<96x32xbf16>, vector<128x32xf32> -> vector<128x32xf32>
    %83 = arith.addf %75, %82 : vector<128x32xf32>
    %c1_i32_66 = arith.constant 1 : i32
    %84 = arith.addi %74, %c1_i32_66 : i32
    %85 = arith.index_cast %84 : i32 to index
    %c0_67 = arith.constant 0 : index
    %c0_68 = arith.constant 0 : index
    %86 = vector.load %arg7[%85, %c0_67, %c0_68] : memref<18x16x96xbf16, #tpu.memory_space<vmem>>, vector<8x16x96xbf16>
    %87 = vector.shape_cast %86 : vector<8x16x96xbf16> to vector<128x96xbf16>
    %c1_69 = arith.constant 1 : index
    %c0_70 = arith.constant 0 : index
    %c0_71 = arith.constant 0 : index
    %88 = vector.load %arg4[%c1_69, %c0_70, %c0_71] : memref<3x96x32xbf16, #tpu.memory_space<vmem>>, vector<1x96x32xbf16>
    %89 = vector.shape_cast %88 : vector<1x96x32xbf16> to vector<96x32xbf16>
    %cst_72 = arith.constant dense<0.000000e+00> : vector<128x32xf32>
    %90 = tpu.matmul %87, %89, %cst_72 {dimension_numbers = #tpu.dot_dimension_numbers<[1], [0], [0], [1], [0, 0, 1, 1], [], []>} : vector<128x96xbf16>, vector<96x32xbf16>, vector<128x32xf32> -> vector<128x32xf32>
    %91 = arith.addf %83, %90 : vector<128x32xf32>
    %c2_i32_73 = arith.constant 2 : i32
    %92 = arith.addi %74, %c2_i32_73 : i32
    %93 = arith.index_cast %92 : i32 to index
    %c0_74 = arith.constant 0 : index
    %c0_75 = arith.constant 0 : index
    %94 = vector.load %arg7[%93, %c0_74, %c0_75] : memref<18x16x96xbf16, #tpu.memory_space<vmem>>, vector<8x16x96xbf16>
    %95 = vector.shape_cast %94 : vector<8x16x96xbf16> to vector<128x96xbf16>
    %c2_76 = arith.constant 2 : index
    %c0_77 = arith.constant 0 : index
    %c0_78 = arith.constant 0 : index
    %96 = vector.load %arg4[%c2_76, %c0_77, %c0_78] : memref<3x96x32xbf16, #tpu.memory_space<vmem>>, vector<1x96x32xbf16>
    %97 = vector.shape_cast %96 : vector<1x96x32xbf16> to vector<96x32xbf16>
    %cst_79 = arith.constant dense<0.000000e+00> : vector<128x32xf32>
    %98 = tpu.matmul %95, %97, %cst_79 {dimension_numbers = #tpu.dot_dimension_numbers<[1], [0], [0], [1], [0, 0, 1, 1], [], []>} : vector<128x96xbf16>, vector<96x32xbf16>, vector<128x32xf32> -> vector<128x32xf32>
    %99 = arith.addf %91, %98 : vector<128x32xf32>
    %c0_80 = arith.constant 0 : index
    %100 = arith.index_cast %74 : i32 to index
    %c0_81 = arith.constant 0 : index
    %c0_82 = arith.constant 0 : index
    %101 = vector.load %arg1[%c0_80, %100, %c0_81, %c0_82] : memref<1x16x16x32xbf16, #tpu.memory_space<vmem>>, vector<1x8x16x32xbf16>
    %102 = vector.shape_cast %101 : vector<1x8x16x32xbf16> to vector<8x16x32xbf16>
    %103 = vector.shape_cast %102 : vector<8x16x32xbf16> to vector<128x32xbf16>
    %104 = arith.extf %103 : vector<128x32xbf16> to vector<128x32xf32>
    %105 = vector.broadcast %29 : vector<1x32xf32> to vector<128x32xf32>
    %106 = arith.addf %99, %105 : vector<128x32xf32>
    %107 = arith.addf %106, %104 : vector<128x32xf32>
    %cst_83 = arith.constant 0.000000e+00 : f32
    %108 = vector.broadcast %cst_83 : f32 to vector<128x32xf32>
    %109 = arith.maximumf %107, %108 : vector<128x32xf32>
    %110 = vector.shape_cast %109 : vector<128x32xf32> to vector<8x16x32xf32>
    %111 = arith.truncf %110 : vector<8x16x32xf32> to vector<8x16x32xbf16>
    %c0_84 = arith.constant 0 : index
    %112 = arith.index_cast %74 : i32 to index
    %c0_85 = arith.constant 0 : index
    %c0_86 = arith.constant 0 : index
    %113 = vector.load %arg6[%c0_84, %112, %c0_85, %c0_86] : memref<1x16x16x32xbf16, #tpu.memory_space<vmem>>, vector<1x8x16x32xbf16>
    %114 = vector.shape_cast %113 : vector<1x8x16x32xbf16> to vector<8x16x32xbf16>
    %115 = vector.shape_cast %111 : vector<8x16x32xbf16> to vector<1x8x16x32xbf16>
    tpu.vector_store %arg6[%c0_84, %112, %c0_85, %c0_86], %115 {strides = array<i32>} : memref<1x16x16x32xbf16, #tpu.memory_space<vmem>>, vector<1x8x16x32xbf16>,
    %c2_i32_87 = arith.constant 2 : i32
    return
  }
  func.func @transform_0(%arg0: i32) -> (i32, i32, i32, i32) {
    %c0_i32 = arith.constant 0 : i32
    %c0_i32_0 = arith.constant 0 : i32
    %c0_i32_1 = arith.constant 0 : i32
    %c0_i32_2 = arith.constant 0 : i32
    return %arg0, %c0_i32, %c0_i32_0, %c0_i32_1 : i32, i32, i32, i32
  }
  func.func @transform_1(%arg0: i32) -> (i32, i32) {
    %c0_i32 = arith.constant 0 : i32
    %c0_i32_0 = arith.constant 0 : i32
    %c0_i32_1 = arith.constant 0 : i32
    return %c0_i32, %c0_i32_0 : i32, i32
  }
  func.func @transform_2(%arg0: i32) -> (i32, i32) {
    %c0_i32 = arith.constant 0 : i32
    %c0_i32_0 = arith.constant 0 : i32
    %c0_i32_1 = arith.constant 0 : i32
    return %c0_i32, %c0_i32_0 : i32, i32
  }
  func.func @transform_3(%arg0: i32) -> (i32, i32, i32) {
    %c0_i32 = arith.constant 0 : i32
    %c0_i32_0 = arith.constant 0 : i32
    %c0_i32_1 = arith.constant 0 : i32
    %c0_i32_2 = arith.constant 0 : i32
    return %c0_i32, %c0_i32_0, %c0_i32_1 : i32, i32, i32
  }
  func.func @transform_4(%arg0: i32) -> (i32, i32) {
    %c0_i32 = arith.constant 0 : i32
    %c0_i32_0 = arith.constant 0 : i32
    %c0_i32_1 = arith.constant 0 : i32
    return %c0_i32, %c0_i32_0 : i32, i32
  }
  func.func @transform_5(%arg0: i32) -> (i32, i32, i32, i32) {
    %c0_i32 = arith.constant 0 : i32
    %c0_i32_0 = arith.constant 0 : i32
    %c0_i32_1 = arith.constant 0 : i32
    %c0_i32_2 = arith.constant 0 : i32
    return %arg0, %c0_i32, %c0_i32_0, %c0_i32_1 : i32, i32, i32, i32
  }
}

</mosaic_0001>

<llo_original>
// kernel: basic_block_pallas.1
$region0: #{basic_block_pallas.1}
  #allocation0 [shape = 'u32[]', space=smem, size = 0x4, offset = 0x4, fixed_abs, tag = 'smem constant byte address 0x4 - core index']
  #allocation1 [shape = 'u32[144,128]{1,0:T(1,128)}', space=vmem, size = 0x12000, scoped, tag = 'internal scratch']
  #allocation2 [shape = 'bf16[18,16,96]{2,1,0:T(16,128)(2,1)}', space=vmem, size = 0x12000, scoped, tag = 'scratch operand']
  %s0 = inlined_call_operand.vmem [shape: bf16[2,16,16,32], index: 0, kind: input, shape index: {}]
  %s1 = inlined_call_operand.vmem [shape: bf16[32,32], index: 1, kind: input, shape index: {}]
  %s2 = inlined_call_operand.vmem [shape: f32[1,32], index: 2, kind: input, shape index: {}]
  %s3 = inlined_call_operand.vmem [shape: bf16[3,96,32], index: 3, kind: input, shape index: {}]
  %s4 = inlined_call_operand.vmem [shape: f32[1,32], index: 4, kind: input, shape index: {}]
  %s5 = inlined_call_operand.vmem [shape: bf16[2,16,16,32], index: 5, kind: output, shape index: {}]
  %s6 = sld [smem:[#allocation0]]
  $region53: #{basic_block_pallas.1} parent=0
    _
  %s8 = ssub.s32 1, %s6
  %s9 = scalar_select 0, %s8, %s6
  loop: start=0, step=1, limit=4
  $region2: #{basic_block_pallas.1} parent=0 // loop_pre_header
    _
  $region3: #{basic_block_pallas.1} parent=0 // loop_header
    %s11 = sphi 0, %s15
    %p12 = scmp.ge.s32.totalorder %s11, 4
    %s21 = sphi 0, %s23
    %s24 = sphi 0, %s21
    %s25 = sphi 0, %s24
    %s41 = sphi 0, %s25
    %s45 = sphi 0, %s45
    %s47 = sphi 0, %s45
    %s48 = sphi 0, %s47
    %s62 = sphi 0, %s48
    %s66 = sphi 0, %s66
    %s68 = sphi 0, %s66
    %s69 = sphi 0, %s68
    %s83 = sphi 0, %s69
    %s87 = sphi 0, %s87
    %s89 = sphi 0, %s87
    %s90 = sphi 0, %s89
    %s104 = sphi 0, %s90
    %s108 = sphi 0, %s108
    %s110 = sphi 0, %s108
    %s111 = sphi 0, %s110
    %s125 = sphi 0, %s111
    %s131 = sphi 0, %s133
    %s134 = sphi 0, %s131
    %s135 = sphi 0, %s134
    %s151 = sphi 0, %s135
  $region4: #{basic_block_pallas.1} parent=0 // loop_header_branch
    %14 = sbr.rel (%p12) target = $region8
  $region5: #{basic_block_pallas.1} parent=0 // loop_body
    %s16 = ssub.s32 %s11, 1
    %s17 = ssub.s32 %s11, 2
    %s18 = sadd.s32 %s11, 1
    %s19 = ssub.s32 %s11, %s18
    %p20 = scmp.eq.s32.totalorder %s19, 0
    %s22 = sadd.s32 %s21, 1
    %s23 = scalar_select %p20, %s21, %s22
    %p26 = pneg %p20
    %p27 = scmp.eq.s32.totalorder %s11, 1
    %p28 = por %p26, %p27
    %p29 = scmp.ne.s32.totalorder %s21, %s24
    %p30 = scmp.eq.s32.totalorder %s11, 0
    %p31 = por %p29, %p30
    %p32 = scmp.ne.s32.totalorder %s21, %s24
    %p33 = scmp.eq.s32.totalorder %s16, 1
    %p34 = por %p32, %p33
    %p35 = scmp.ne.s32.totalorder %s24, %s25
    %p36 = scmp.eq.s32.totalorder %s16, 0
    %p37 = por %p35, %p36
    %p38 = scmp.ne.s32.totalorder %s24, %s25
    %p39 = scmp.eq.s32.totalorder %s17, 1
    %p40 = por %p38, %p39
    %p42 = scmp.ne.s32.totalorder %s25, %s41
    %p43 = scmp.eq.s32.totalorder %s17, 0
    %p44 = por %p42, %p43
    %s46 = sadd.s32 %s45, 1
    %p49 = scmp.eq.s32.totalorder %s11, 1
    %p50 = scmp.ne.s32.totalorder %s45, %s47
    %p51 = scmp.eq.s32.totalorder %s11, 0
    %p52 = por %p50, %p51
    %p53 = scmp.ne.s32.totalorder %s45, %s47
    %p54 = scmp.eq.s32.totalorder %s16, 1
    %p55 = por %p53, %p54
    %p56 = scmp.ne.s32.totalorder %s47, %s48
    %p57 = scmp.eq.s32.totalorder %s16, 0
    %p58 = por %p56, %p57
    %p59 = scmp.ne.s32.totalorder %s47, %s48
    %p60 = scmp.eq.s32.totalorder %s17, 1
    %p61 = por %p59, %p60
    %p63 = scmp.ne.s32.totalorder %s48, %s62
    %p64 = scmp.eq.s32.totalorder %s17, 0
    %p65 = por %p63, %p64
    %s67 = sadd.s32 %s66, 1
    %p70 = scmp.eq.s32.totalorder %s11, 1
    %p71 = scmp.ne.s32.totalorder %s66, %s68
    %p72 = scmp.eq.s32.totalorder %s11, 0
    %p73 = por %p71, %p72
    %p74 = scmp.ne.s32.totalorder %s66, %s68
    %p75 = scmp.eq.s32.totalorder %s16, 1
    %p76 = por %p74, %p75
    %p77 = scmp.ne.s32.totalorder %s68, %s69
    %p78 = scmp.eq.s32.totalorder %s16, 0
    %p79 = por %p77, %p78
    %p80 = scmp.ne.s32.totalorder %s68, %s69
    %p81 = scmp.eq.s32.totalorder %s17, 1
    %p82 = por %p80, %p81
    %p84 = scmp.ne.s32.totalorder %s69, %s83
    %p85 = scmp.eq.s32.totalorder %s17, 0
    %p86 = por %p84, %p85
    %s88 = sadd.s32 %s87, 1
    %p91 = scmp.eq.s32.totalorder %s11, 1
    %p92 = scmp.ne.s32.totalorder %s87, %s89
    %p93 = scmp.eq.s32.totalorder %s11, 0
    %p94 = por %p92, %p93
    %p95 = scmp.ne.s32.totalorder %s87, %s89
    %p96 = scmp.eq.s32.totalorder %s16, 1
    %p97 = por %p95, %p96
    %p98 = scmp.ne.s32.totalorder %s89, %s90
    %p99 = scmp.eq.s32.totalorder %s16, 0
    %p100 = por %p98, %p99
    %p101 = scmp.ne.s32.totalorder %s89, %s90
    %p102 = scmp.eq.s32.totalorder %s17, 1
    %p103 = por %p101, %p102
    %p105 = scmp.ne.s32.totalorder %s90, %s104
    %p106 = scmp.eq.s32.totalorder %s17, 0
    %p107 = por %p105, %p106
    %s109 = sadd.s32 %s108, 1
    %p112 = scmp.eq.s32.totalorder %s11, 1
    %p113 = scmp.ne.s32.totalorder %s108, %s110
    %p114 = scmp.eq.s32.totalorder %s11, 0
    %p115 = por %p113, %p114
    %p116 = scmp.ne.s32.totalorder %s108, %s110
    %p117 = scmp.eq.s32.totalorder %s16, 1
    %p118 = por %p116, %p117
    %p119 = scmp.ne.s32.totalorder %s110, %s111
    %p120 = scmp.eq.s32.totalorder %s16, 0
    %p121 = por %p119, %p120
    %p122 = scmp.ne.s32.totalorder %s110, %s111
    %p123 = scmp.eq.s32.totalorder %s17, 1
    %p124 = por %p122, %p123
    %p126 = scmp.ne.s32.totalorder %s111, %s125
    %p127 = scmp.eq.s32.totalorder %s17, 0
    %p128 = por %p126, %p127
    %s129 = ssub.s32 %s11, %s18
    %p130 = scmp.eq.s32.totalorder %s129, 0
    %s132 = sadd.s32 %s131, 1
    %s133 = scalar_select %p130, %s131, %s132
    %p136 = pneg %p130
    %p137 = scmp.eq.s32.totalorder %s11, 1
    %p138 = por %p136, %p137
    %p139 = scmp.ne.s32.totalorder %s131, %s134
    %p140 = scmp.eq.s32.totalorder %s11, 0
    %p141 = por %p139, %p140
    %p142 = scmp.ne.s32.totalorder %s131, %s134
    %p143 = scmp.eq.s32.totalorder %s16, 1
    %p144 = por %p142, %p143
    %p145 = scmp.ne.s32.totalorder %s134, %s135
    %p146 = scmp.eq.s32.totalorder %s16, 0
    %p147 = por %p145, %p146
    %p148 = scmp.ne.s32.totalorder %s134, %s135
    %p149 = scmp.eq.s32.totalorder %s17, 1
    %p150 = por %p148, %p149
    %p152 = scmp.ne.s32.totalorder %s135, %s151
    %p153 = scmp.eq.s32.totalorder %s17, 0
    %p154 = por %p152, %p153
    %p155 = scmp.le.s32.totalorder 1, %s11
    %p156 = scmp.lt.s32.totalorder %s11, 3
    %p157 = pnand %p155, %p156
    %p158 = pneg %p157
    // Predicated region
    $region9: #{basic_block_pallas.1} parent=5 // pred_check
      _
    $region10: #{basic_block_pallas.1} parent=5 // pred_check_branch
      %160 = sbr.rel (%p157) target = $region12
    $region11: #{basic_block_pallas.1} parent=5 // pred_region
      %s161 = ssub.s32 %s11, 1
      // Predicated region
      $region13: #{basic_block_pallas.1} parent=11 // pred_check
        %p162 = pneg %p58
      $region14: #{basic_block_pallas.1} parent=11 // pred_check_branch
        %164 = sbr.rel (%p162) target = $region16
      $region15: #{basic_block_pallas.1} parent=11 // pred_region
        _
      $region16: #{basic_block_pallas.1} parent=11 // pred_fallthru
        _
      // Predicated region
      $region17: #{basic_block_pallas.1} parent=11 // pred_check
        %p165 = pneg %p79
      $region18: #{basic_block_pallas.1} parent=11 // pred_check_branch
        %167 = sbr.rel (%p165) target = $region20
      $region19: #{basic_block_pallas.1} parent=11 // pred_region
        _
      $region20: #{basic_block_pallas.1} parent=11 // pred_fallthru
        _
      // Predicated region
      $region21: #{basic_block_pallas.1} parent=11 // pred_check
        %p168 = pneg %p100
      $region22: #{basic_block_pallas.1} parent=11 // pred_check_branch
        %170 = sbr.rel (%p168) target = $region24
      $region23: #{basic_block_pallas.1} parent=11 // pred_region
        _
      $region24: #{basic_block_pallas.1} parent=11 // pred_fallthru
        _
      // Predicated region
      $region25: #{basic_block_pallas.1} parent=11 // pred_check
        %p171 = pneg %p121
      $region26: #{basic_block_pallas.1} parent=11 // pred_check_branch
        %173 = sbr.rel (%p171) target = $region28
      $region27: #{basic_block_pallas.1} parent=11 // pred_region
        _
      $region28: #{basic_block_pallas.1} parent=11 // pred_fallthru
        _
    $region12: #{basic_block_pallas.1} parent=5 // pred_fallthru
      _
    %p174 = scmp.lt.s32.totalorder %s11, 2
    // Predicated region
    $region29: #{basic_block_pallas.1} parent=5 // pred_check
      %p175 = pneg %p174
    $region30: #{basic_block_pallas.1} parent=5 // pred_check_branch
      %177 = sbr.rel (%p175) target = $region32
    $region31: #{basic_block_pallas.1} parent=5 // pred_region
      // Predicated region
      $region33: #{basic_block_pallas.1} parent=31 // pred_check
        %p178 = pneg %p31
      $region34: #{basic_block_pallas.1} parent=31 // pred_check_branch
        %180 = sbr.rel (%p178) target = $region36
      $region35: #{basic_block_pallas.1} parent=31 // pred_region
        %p181 = scmp.lt.s32.totalorder %s11, 1
        %s182 = scalar_select %p181, %s11, 1
        %s183 = smul.addr %s182, 32
        %s184 = smul.addr %s183, 4
        %s185 = scalar_lea.vmem %s0, %s184
      $region36: #{basic_block_pallas.1} parent=31 // pred_fallthru
        _
    $region32: #{basic_block_pallas.1} parent=5 // pred_fallthru
      _
    %p186 = scmp.le.s32.totalorder 1, %s11
    %p187 = scmp.lt.s32.totalorder %s11, 3
    %p188 = pnand %p186, %p187
    %p189 = pneg %p188
    // Predicated region
    $region37: #{basic_block_pallas.1} parent=5 // pred_check
      _
    $region38: #{basic_block_pallas.1} parent=5 // pred_check_branch
      %191 = sbr.rel (%p188) target = $region40
    $region39: #{basic_block_pallas.1} parent=5 // pred_region
      %s192 = ssub.s32 %s11, 1
      %p193 = scmp.lt.s32.totalorder %s16, 1
      %s194 = scalar_select %p193, %s16, 1
      %s195 = smul.addr %s194, 32
      %s196 = smul.addr %s195, 4
      %s197 = scalar_lea.vmem %s0, %s196
      %p198 = pneg %p37
      %p199 = pneg %p34
      %p200 = pneg %p58
      %p201 = pneg %p55
      %p202 = pneg %p79
      %p203 = pneg %p76
      %p204 = pneg %p100
      %p205 = pneg %p97
      %p206 = pneg %p121
      %p207 = pneg %p118
      %p208 = pneg %p147
      %p209 = pneg %p144
      %p210 = scmp.lt.s32.totalorder %s16, 1
      %s211 = scalar_select %p210, %s16, 1
      %s212 = smul.addr %s211, 32
      %s213 = smul.addr %s212, 4
      %s214 = scalar_lea.vmem %s5, %s213
      %p215 = scmp.lt.s32.totalorder %s16, 1
      %s216 = scalar_select %p215, %s16, 1
      %s217 = smul.addr %s216, 32
      %s218 = smul.addr %s217, 4
      %s219 = scalar_lea.vmem %s0, %s218
      %p220 = scmp.lt.s32.totalorder %s16, 1
      %s221 = scalar_select %p220, %s16, 1
      %s222 = smul.addr %s221, 32
      %s223 = smul.addr %s222, 4
      %s224 = scalar_lea.vmem %s5, %s223
      %v226 = vld [vmem:[%s219] sm:$0xf]
      %v227 = vld [vmem:[%s219 + $0x4] sm:$0xf]
      %v228 = vld [vmem:[%s219 + $0x8] sm:$0xf]
      %v229 = vld [vmem:[%s219 + $0xc] sm:$0xf]
      %v230 = vld [vmem:[%s219 + $0x10] sm:$0xf]
      %v231 = vld [vmem:[%s219 + $0x14] sm:$0xf]
      %v232 = vld [vmem:[%s219 + $0x18] sm:$0xf]
      %v233 = vld [vmem:[%s219 + $0x1c] sm:$0xf]
      %v234 = vld [vmem:[%s219 + $0x20] sm:$0xf]
      %v235 = vld [vmem:[%s219 + $0x24] sm:$0xf]
      %v236 = vld [vmem:[%s219 + $0x28] sm:$0xf]
      %v237 = vld [vmem:[%s219 + $0x2c] sm:$0xf]
      %v238 = vld [vmem:[%s219 + $0x30] sm:$0xf]
      %v239 = vld [vmem:[%s219 + $0x34] sm:$0xf]
      %v240 = vld [vmem:[%s219 + $0x38] sm:$0xf]
      %v241 = vld [vmem:[%s219 + $0x3c] sm:$0xf]
      %v242 = vld [vmem:[%s219 + $0x40] sm:$0xf]
      %v243 = vld [vmem:[%s219 + $0x44] sm:$0xf]
      %v244 = vld [vmem:[%s219 + $0x48] sm:$0xf]
      %v245 = vld [vmem:[%s219 + $0x4c] sm:$0xf]
      %v246 = vld [vmem:[%s219 + $0x50] sm:$0xf]
      %v247 = vld [vmem:[%s219 + $0x54] sm:$0xf]
      %v248 = vld [vmem:[%s219 + $0x58] sm:$0xf]
      %v249 = vld [vmem:[%s219 + $0x5c] sm:$0xf]
      %v250 = vld [vmem:[%s219 + $0x60] sm:$0xf]
      %v251 = vld [vmem:[%s219 + $0x64] sm:$0xf]
      %v252 = vld [vmem:[%s219 + $0x68] sm:$0xf]
      %v253 = vld [vmem:[%s219 + $0x6c] sm:$0xf]
      %v254 = vld [vmem:[%s219 + $0x70] sm:$0xf]
      %v255 = vld [vmem:[%s219 + $0x74] sm:$0xf]
      %v256 = vld [vmem:[%s219 + $0x78] sm:$0xf]
      %v257 = vld [vmem:[%s219 + $0x7c] sm:$0xf]
      %v258 = vld [vmem:[%s1] sm:$0xf]
      %v259 = vld [vmem:[%s1 + $0x4] sm:$0xf]
      %v260 = vld [vmem:[%s1 + $0x8] sm:$0xf]
      %v261 = vld [vmem:[%s1 + $0xc] sm:$0xf]
      %v262 = vld [vmem:[%s2] sm:$0x1]
      %v264 = vlaneseq
      %v265 = vshrl.u32 %v264, 7
      %v266 = vsub.s32 0, %v265
      %v267 = vrot.slane %v262, %v266
      %v301 = vunpack.c.l.b16 %v226
      %v302 = vunpack.c.l.b16 %v227
      %v303 = vunpack.c.l.b16 %v228
      %v304 = vunpack.c.l.b16 %v229
      %v305 = vunpack.c.l.b16 %v230
      %v306 = vunpack.c.l.b16 %v231
      %v307 = vunpack.c.l.b16 %v232
      %v308 = vunpack.c.l.b16 %v233
      %v309 = vunpack.c.l.b16 %v234
      %v310 = vunpack.c.l.b16 %v235
      %v311 = vunpack.c.l.b16 %v236
      %v312 = vunpack.c.l.b16 %v237
      %v313 = vunpack.c.l.b16 %v238
      %v314 = vunpack.c.l.b16 %v239
      %v315 = vunpack.c.l.b16 %v240
      %v316 = vunpack.c.l.b16 %v241
      %v317 = vunpack.c.l.b16 %v242
      %v318 = vunpack.c.l.b16 %v243
      %v319 = vunpack.c.l.b16 %v244
      %v320 = vunpack.c.l.b16 %v245
      %v321 = vunpack.c.l.b16 %v246
      %v322 = vunpack.c.l.b16 %v247
      %v323 = vunpack.c.l.b16 %v248
      %v324 = vunpack.c.l.b16 %v249
      %v325 = vunpack.c.l.b16 %v250
      %v326 = vunpack.c.l.b16 %v251
      %v327 = vunpack.c.l.b16 %v252
      %v328 = vunpack.c.l.b16 %v253
      %v329 = vunpack.c.l.b16 %v254
      %v330 = vunpack.c.l.b16 %v255
      %v331 = vunpack.c.l.b16 %v256
      %v332 = vunpack.c.l.b16 %v257
      %v333 = vpack.c.b16 %v302, %v301
      %v334 = vpack.c.b16 %v304, %v303
      %v335 = vpack.c.b16 %v306, %v305
      %v336 = vpack.c.b16 %v308, %v307
      %v337 = vpack.c.b16 %v310, %v309
      %v338 = vpack.c.b16 %v312, %v311
      %v339 = vpack.c.b16 %v314, %v313
      %v340 = vpack.c.b16 %v316, %v315
      %v341 = vpack.c.b16 %v318, %v317
      %v342 = vpack.c.b16 %v320, %v319
      %v343 = vpack.c.b16 %v322, %v321
      %v344 = vpack.c.b16 %v324, %v323
      %v345 = vpack.c.b16 %v326, %v325
      %v346 = vpack.c.b16 %v328, %v327
      %v347 = vpack.c.b16 %v330, %v329
      %v348 = vpack.c.b16 %v332, %v331
      %v353 = vunpack.c.l.b16 %v258
      %v354 = vunpack.c.l.b16 %v259
      %v355 = vunpack.c.l.b16 %v260
      %v356 = vunpack.c.l.b16 %v261
      %v357 = vpack.c.b16 %v354, %v353
      %v358 = vpack.c.b16 %v356, %v355
      %vm361 = vcmask 261120
      %v363 = vsel %vm361, %v333, 0
      %v366 = vsel %vm361, %v334, 0
      %v369 = vsel %vm361, %v335, 0
      %v372 = vsel %vm361, %v336, 0
      %v375 = vsel %vm361, %v337, 0
      %v378 = vsel %vm361, %v338, 0
      %v381 = vsel %vm361, %v339, 0
      %v384 = vsel %vm361, %v340, 0
      %v387 = vsel %vm361, %v341, 0
      %v390 = vsel %vm361, %v342, 0
      %v393 = vsel %vm361, %v343, 0
      %v396 = vsel %vm361, %v344, 0
      %v399 = vsel %vm361, %v345, 0
      %v402 = vsel %vm361, %v346, 0
      %v405 = vsel %vm361, %v347, 0
      %v408 = vsel %vm361, %v348, 0
      %410 = vmatprep.subr.bf16.mxu0 0
      %411 = vmatpush1.bf16.msra.mxu0 %v357
      %412 = vmatprep.subr.bf16.mxu0 0
      %413 = vmatpush1.bf16.msra.mxu0 %v358
      %414 = vmatprep.subr.bf16.mxu0 0
      %415 = vmatpush1.bf16.msra.mxu0 0
      %416 = vmatprep.subr.bf16.mxu0 0
      %417 = vmatpush1.bf16.msra.mxu0 0
      %418 = vmatprep.subr.bf16.mxu0 0
      %419 = vmatpush1.bf16.msra.mxu0 0
      %420 = vmatprep.subr.bf16.mxu0 0
      %421 = vmatpush1.bf16.msra.mxu0 0
      %422 = vmatprep.subr.bf16.mxu0 0
      %423 = vmatpush1.bf16.msra.mxu0 0
      %424 = vmatprep.subr.bf16.mxu0 0
      %425 = vmatpush1.bf16.msra.mxu0 0
      %426 = vmatprep.subr.bf16.mxu0 0
      %427 = vmatpush1.bf16.msra.mxu0 0
      %428 = vmatprep.subr.bf16.mxu0 0
      %429 = vmatpush1.bf16.msra.mxu0 0
      %430 = vmatprep.subr.bf16.mxu0 0
      %431 = vmatpush1.bf16.msra.mxu0 0
      %432 = vmatprep.subr.bf16.mxu0 0
      %433 = vmatpush1.bf16.msra.mxu0 0
      %434 = vmatprep.subr.bf16.mxu0 0
      %435 = vmatpush1.bf16.msra.mxu0 0
      %436 = vmatprep.subr.bf16.mxu0 0
      %437 = vmatpush1.bf16.msra.mxu0 0
      %438 = vmatprep.subr.bf16.mxu0 0
      %439 = vmatpush1.bf16.msra.mxu0 0
      %440 = vmatprep.subr.bf16.mxu0 0
      %441 = vmatpush1.bf16.msra.mxu0 0
      %442 = vmatprep.mubr.bf16.mxu0 0
      %443 = vmatmul.mubr.bf16.gmra.mrb[0].mxu0 %v363
      %v444 = vpop.f32.mrb[0].mxu0
      %v445 = vadd.f32 %v267, %v444
      %v446 = vpop.f32.mrb[0].mxu0
      %v447 = vpop.f32.mrb[0].mxu0
      %v448 = vadd.f32 %v267, %v447
      %v449 = vpop.f32.mrb[0].mxu0
      %450 = vmatprep.mubr.bf16.mxu0 0
      %451 = vmatmul.mubr.bf16.gmra.mrb[0].mxu0 %v366
      %v452 = vpop.f32.mrb[0].mxu0
      %v453 = vadd.f32 %v267, %v452
      %v454 = vpop.f32.mrb[0].mxu0
      %v455 = vpop.f32.mrb[0].mxu0
      %v456 = vadd.f32 %v267, %v455
      %v457 = vpop.f32.mrb[0].mxu0
      %458 = vmatprep.mubr.bf16.mxu0 0
      %459 = vmatmul.mubr.bf16.gmra.mrb[0].mxu0 %v369
      %v460 = vpop.f32.mrb[0].mxu0
      %v461 = vadd.f32 %v267, %v460
      %v462 = vpop.f32.mrb[0].mxu0
      %v463 = vpop.f32.mrb[0].mxu0
      %v464 = vadd.f32 %v267, %v463
      %v465 = vpop.f32.mrb[0].mxu0
      %466 = vmatprep.mubr.bf16.mxu0 0
      %467 = vmatmul.mubr.bf16.gmra.mrb[0].mxu0 %v372
      %v468 = vpop.f32.mrb[0].mxu0
      %v469 = vadd.f32 %v267, %v468
      %v470 = vpop.f32.mrb[0].mxu0
      %v471 = vpop.f32.mrb[0].mxu0
      %v472 = vadd.f32 %v267, %v471
      %v473 = vpop.f32.mrb[0].mxu0
      %474 = vmatprep.mubr.bf16.mxu0 0
      %475 = vmatmul.mubr.bf16.gmra.mrb[0].mxu0 %v375
      %v476 = vpop.f32.mrb[0].mxu0
      %v477 = vadd.f32 %v267, %v476
      %v478 = vpop.f32.mrb[0].mxu0
      %v479 = vpop.f32.mrb[0].mxu0
      %v480 = vadd.f32 %v267, %v479
      %v481 = vpop.f32.mrb[0].mxu0
      %482 = vmatprep.mubr.bf16.mxu0 0
      %483 = vmatmul.mubr.bf16.gmra.mrb[0].mxu0 %v378
      %v484 = vpop.f32.mrb[0].mxu0
      %v485 = vadd.f32 %v267, %v484
      %v486 = vpop.f32.mrb[0].mxu0
      %v487 = vpop.f32.mrb[0].mxu0
      %v488 = vadd.f32 %v267, %v487
      %v489 = vpop.f32.mrb[0].mxu0
      %490 = vmatprep.mubr.bf16.mxu0 0
      %491 = vmatmul.mubr.bf16.gmra.mrb[0].mxu0 %v381
      %v492 = vpop.f32.mrb[0].mxu0
      %v493 = vadd.f32 %v267, %v492
      %v494 = vpop.f32.mrb[0].mxu0
      %v495 = vpop.f32.mrb[0].mxu0
      %v496 = vadd.f32 %v267, %v495
      %v497 = vpop.f32.mrb[0].mxu0
      %498 = vmatprep.mubr.bf16.mxu0 0
      %499 = vmatmul.mubr.bf16.gmra.mrb[0].mxu0 %v384
      %v500 = vpop.f32.mrb[0].mxu0
      %v501 = vadd.f32 %v267, %v500
      %v502 = vpop.f32.mrb[0].mxu0
      %v503 = vpop.f32.mrb[0].mxu0
      %v504 = vadd.f32 %v267, %v503
      %v505 = vpop.f32.mrb[0].mxu0
      %506 = vmatprep.mubr.bf16.mxu0 0
      %507 = vmatmul.mubr.bf16.gmra.mrb[0].mxu0 %v387
      %v508 = vpop.f32.mrb[0].mxu0
      %v509 = vadd.f32 %v267, %v508
      %v510 = vpop.f32.mrb[0].mxu0
      %v511 = vpop.f32.mrb[0].mxu0
      %v512 = vadd.f32 %v267, %v511
      %v513 = vpop.f32.mrb[0].mxu0
      %514 = vmatprep.mubr.bf16.mxu0 0
      %515 = vmatmul.mubr.bf16.gmra.mrb[0].mxu0 %v390
      %v516 = vpop.f32.mrb[0].mxu0
      %v517 = vadd.f32 %v267, %v516
      %v518 = vpop.f32.mrb[0].mxu0
      %v519 = vpop.f32.mrb[0].mxu0
      %v520 = vadd.f32 %v267, %v519
      %v521 = vpop.f32.mrb[0].mxu0
      %522 = vmatprep.mubr.bf16.mxu0 0
      %523 = vmatmul.mubr.bf16.gmra.mrb[0].mxu0 %v393
      %v524 = vpop.f32.mrb[0].mxu0
      %v525 = vadd.f32 %v267, %v524
      %v526 = vpop.f32.mrb[0].mxu0
      %v527 = vpop.f32.mrb[0].mxu0
      %v528 = vadd.f32 %v267, %v527
      %v529 = vpop.f32.mrb[0].mxu0
      %530 = vmatprep.mubr.bf16.mxu0 0
      %531 = vmatmul.mubr.bf16.gmra.mrb[0].mxu0 %v396
      %v532 = vpop.f32.mrb[0].mxu0
      %v533 = vadd.f32 %v267, %v532
      %v534 = vpop.f32.mrb[0].mxu0
      %v535 = vpop.f32.mrb[0].mxu0
      %v536 = vadd.f32 %v267, %v535
      %v537 = vpop.f32.mrb[0].mxu0
      %538 = vmatprep.mubr.bf16.mxu0 0
      %539 = vmatmul.mubr.bf16.gmra.mrb[0].mxu0 %v399
      %v540 = vpop.f32.mrb[0].mxu0
      %v541 = vadd.f32 %v267, %v540
      %v542 = vpop.f32.mrb[0].mxu0
      %v543 = vpop.f32.mrb[0].mxu0
      %v544 = vadd.f32 %v267, %v543
      %v545 = vpop.f32.mrb[0].mxu0
      %546 = vmatprep.mubr.bf16.mxu0 0
      %547 = vmatmul.mubr.bf16.gmra.mrb[0].mxu0 %v402
      %v548 = vpop.f32.mrb[0].mxu0
      %v549 = vadd.f32 %v267, %v548
      %v550 = vpop.f32.mrb[0].mxu0
      %v551 = vpop.f32.mrb[0].mxu0
      %v552 = vadd.f32 %v267, %v551
      %v553 = vpop.f32.mrb[0].mxu0
      %554 = vmatprep.mubr.bf16.mxu0 0
      %555 = vmatmul.mubr.bf16.gmra.mrb[0].mxu0 %v405
      %v556 = vpop.f32.mrb[0].mxu0
      %v557 = vadd.f32 %v267, %v556
      %v558 = vpop.f32.mrb[0].mxu0
      %v559 = vpop.f32.mrb[0].mxu0
      %v560 = vadd.f32 %v267, %v559
      %v561 = vpop.f32.mrb[0].mxu0
      %562 = vmatprep.mubr.bf16.mxu0 0
      %563 = vmatmul.mubr.bf16.gmra.mrb[0].mxu0 %v408
      %v564 = vpop.f32.mrb[0].mxu0
      %v565 = vadd.f32 %v267, %v564
      %v566 = vpop.f32.mrb[0].mxu0
      %v567 = vpop.f32.mrb[0].mxu0
      %v568 = vadd.f32 %v267, %v567
      %v569 = vpop.f32.mrb[0].mxu0
      %570 = vdwg.mxu0
      %v571 = vmax.f32 %v445, 0.0
      %v572 = vmax.f32 %v448, 0.0
      %v573 = vmax.f32 %v453, 0.0
      %v574 = vmax.f32 %v456, 0.0
      %v575 = vmax.f32 %v461, 0.0
      %v576 = vmax.f32 %v464, 0.0
      %v577 = vmax.f32 %v469, 0.0
      %v578 = vmax.f32 %v472, 0.0
      %v579 = vmax.f32 %v477, 0.0
      %v580 = vmax.f32 %v480, 0.0
      %v581 = vmax.f32 %v485, 0.0
      %v582 = vmax.f32 %v488, 0.0
      %v583 = vmax.f32 %v493, 0.0
      %v584 = vmax.f32 %v496, 0.0
      %v585 = vmax.f32 %v501, 0.0
      %v586 = vmax.f32 %v504, 0.0
      %v587 = vmax.f32 %v509, 0.0
      %v588 = vmax.f32 %v512, 0.0
      %v589 = vmax.f32 %v517, 0.0
      %v590 = vmax.f32 %v520, 0.0
      %v591 = vmax.f32 %v525, 0.0
      %v592 = vmax.f32 %v528, 0.0
      %v593 = vmax.f32 %v533, 0.0
      %v594 = vmax.f32 %v536, 0.0
      %v595 = vmax.f32 %v541, 0.0
      %v596 = vmax.f32 %v544, 0.0
      %v597 = vmax.f32 %v549, 0.0
      %v598 = vmax.f32 %v552, 0.0
      %v599 = vmax.f32 %v557, 0.0
      %v600 = vmax.f32 %v560, 0.0
      %v601 = vmax.f32 %v565, 0.0
      %v602 = vmax.f32 %v568, 0.0
      %v603 = vpack.c.bf16 %v572, %v571
      %v604 = vpack.c.bf16 %v574, %v573
      %v605 = vpack.c.bf16 %v576, %v575
      %v606 = vpack.c.bf16 %v578, %v577
      %v607 = vpack.c.bf16 %v580, %v579
      %v608 = vpack.c.bf16 %v582, %v581
      %v609 = vpack.c.bf16 %v584, %v583
      %v610 = vpack.c.bf16 %v586, %v585
      %v611 = vpack.c.bf16 %v588, %v587
      %v612 = vpack.c.bf16 %v590, %v589
      %v613 = vpack.c.bf16 %v592, %v591
      %v614 = vpack.c.bf16 %v594, %v593
      %v615 = vpack.c.bf16 %v596, %v595
      %v616 = vpack.c.bf16 %v598, %v597
      %v617 = vpack.c.bf16 %v600, %v599
      %v618 = vpack.c.bf16 %v602, %v601
      %vm619 = vcmask 785408
      %620 = vst.msk [vmem:[#allocation2] sm:$0xff] %vm619, 0
      %s621 = scalar_lea.vmem [#allocation2], 136
      %622 = vst.msk [vmem:[%s621] sm:$0xff] %vm619, 0
      %s623 = scalar_lea.vmem [#allocation2], 8
      %vm624 = vcmask 253952
      %vm625 = vsmask.f32 256
      %vm626 = vmand %vm624, %vm625
      %v627 = vld [vmem:[%s623] sm:$0x1]
      %v628 = vsel %vm626, 0, %v627
      %629 = vst [vmem:[%s623] sm:$0x1] %v628
      %v630 = vld [vmem:[%s623 + $0x8] sm:$0x1]
      %v631 = vsel %vm626, 0, %v630
      %632 = vst [vmem:[%s623 + $0x8] sm:$0x1] %v631
      %v633 = vld [vmem:[%s623 + $0x10] sm:$0x1]
      %v634 = vsel %vm626, 0, %v633
      %635 = vst [vmem:[%s623 + $0x10] sm:$0x1] %v634
      %v636 = vld [vmem:[%s623 + $0x18] sm:$0x1]
      %v637 = vsel %vm626, 0, %v636
      %638 = vst [vmem:[%s623 + $0x18] sm:$0x1] %v637
      %v639 = vld [vmem:[%s623 + $0x20] sm:$0x1]
      %v640 = vsel %vm626, 0, %v639
      %641 = vst [vmem:[%s623 + $0x20] sm:$0x1] %v640
      %v642 = vld [vmem:[%s623 + $0x28] sm:$0x1]
      %v643 = vsel %vm626, 0, %v642
      %644 = vst [vmem:[%s623 + $0x28] sm:$0x1] %v643
      %v645 = vld [vmem:[%s623 + $0x30] sm:$0x1]
      %v646 = vsel %vm626, 0, %v645
      %647 = vst [vmem:[%s623 + $0x30] sm:$0x1] %v646
      %v648 = vld [vmem:[%s623 + $0x38] sm:$0x1]
      %v649 = vsel %vm626, 0, %v648
      %650 = vst [vmem:[%s623 + $0x38] sm:$0x1] %v649
      %v651 = vld [vmem:[%s623 + $0x40] sm:$0x1]
      %v652 = vsel %vm626, 0, %v651
      %653 = vst [vmem:[%s623 + $0x40] sm:$0x1] %v652
      %v654 = vld [vmem:[%s623 + $0x48] sm:$0x1]
      %v655 = vsel %vm626, 0, %v654
      %656 = vst [vmem:[%s623 + $0x48] sm:$0x1] %v655
      %v657 = vld [vmem:[%s623 + $0x50] sm:$0x1]
      %v658 = vsel %vm626, 0, %v657
      %659 = vst [vmem:[%s623 + $0x50] sm:$0x1] %v658
      %v660 = vld [vmem:[%s623 + $0x58] sm:$0x1]
      %v661 = vsel %vm626, 0, %v660
      %662 = vst [vmem:[%s623 + $0x58] sm:$0x1] %v661
      %v663 = vld [vmem:[%s623 + $0x60] sm:$0x1]
      %v664 = vsel %vm626, 0, %v663
      %665 = vst [vmem:[%s623 + $0x60] sm:$0x1] %v664
      %v666 = vld [vmem:[%s623 + $0x68] sm:$0x1]
      %v667 = vsel %vm626, 0, %v666
      %668 = vst [vmem:[%s623 + $0x68] sm:$0x1] %v667
      %v669 = vld [vmem:[%s623 + $0x70] sm:$0x1]
      %v670 = vsel %vm626, 0, %v669
      %671 = vst [vmem:[%s623 + $0x70] sm:$0x1] %v670
      %v672 = vld [vmem:[%s623 + $0x78] sm:$0x1]
      %v673 = vsel %vm626, 0, %v672
      %674 = vst [vmem:[%s623 + $0x78] sm:$0x1] %v673
      %vm675 = vcmask 785927
      %vm676 = vsmask.f32 7966
      %vm677 = vmand %vm675, %vm676
      %v678 = vld [vmem:[%s623] sm:$0x80]
      %v679 = vsel %vm677, 0, %v678
      %680 = vst [vmem:[%s623] sm:$0x80] %v679
      %v681 = vld [vmem:[%s623 + $0x8] sm:$0x80]
      %v682 = vsel %vm677, 0, %v681
      %683 = vst [vmem:[%s623 + $0x8] sm:$0x80] %v682
      %v684 = vld [vmem:[%s623 + $0x10] sm:$0x80]
      %v685 = vsel %vm677, 0, %v684
      %686 = vst [vmem:[%s623 + $0x10] sm:$0x80] %v685
      %v687 = vld [vmem:[%s623 + $0x18] sm:$0x80]
      %v688 = vsel %vm677, 0, %v687
      %689 = vst [vmem:[%s623 + $0x18] sm:$0x80] %v688
      %v690 = vld [vmem:[%s623 + $0x20] sm:$0x80]
      %v691 = vsel %vm677, 0, %v690
      %692 = vst [vmem:[%s623 + $0x20] sm:$0x80] %v691
      %v693 = vld [vmem:[%s623 + $0x28] sm:$0x80]
      %v694 = vsel %vm677, 0, %v693
      %695 = vst [vmem:[%s623 + $0x28] sm:$0x80] %v694
      %v696 = vld [vmem:[%s623 + $0x30] sm:$0x80]
      %v697 = vsel %vm677, 0, %v696
      %698 = vst [vmem:[%s623 + $0x30] sm:$0x80] %v697
      %v699 = vld [vmem:[%s623 + $0x38] sm:$0x80]
      %v700 = vsel %vm677, 0, %v699
      %701 = vst [vmem:[%s623 + $0x38] sm:$0x80] %v700
      %v702 = vld [vmem:[%s623 + $0x40] sm:$0x80]
      %v703 = vsel %vm677, 0, %v702
      %704 = vst [vmem:[%s623 + $0x40] sm:$0x80] %v703
      %v705 = vld [vmem:[%s623 + $0x48] sm:$0x80]
      %v706 = vsel %vm677, 0, %v705
      %707 = vst [vmem:[%s623 + $0x48] sm:$0x80] %v706
      %v708 = vld [vmem:[%s623 + $0x50] sm:$0x80]
      %v709 = vsel %vm677, 0, %v708
      %710 = vst [vmem:[%s623 + $0x50] sm:$0x80] %v709
      %v711 = vld [vmem:[%s623 + $0x58] sm:$0x80]
      %v712 = vsel %vm677, 0, %v711
      %713 = vst [vmem:[%s623 + $0x58] sm:$0x80] %v712
      %v714 = vld [vmem:[%s623 + $0x60] sm:$0x80]
      %v715 = vsel %vm677, 0, %v714
      %716 = vst [vmem:[%s623 + $0x60] sm:$0x80] %v715
      %v717 = vld [vmem:[%s623 + $0x68] sm:$0x80]
      %v718 = vsel %vm677, 0, %v717
      %719 = vst [vmem:[%s623 + $0x68] sm:$0x80] %v718
      %v720 = vld [vmem:[%s623 + $0x70] sm:$0x80]
      %v721 = vsel %vm677, 0, %v720
      %722 = vst [vmem:[%s623 + $0x70] sm:$0x80] %v721
      %v723 = vld [vmem:[%s623 + $0x78] sm:$0x80]
      %v724 = vsel %vm677, 0, %v723
      %725 = vst [vmem:[%s623 + $0x78] sm:$0x80] %v724
      %v727 = vshrl.u32 %v603, 16
      %v729 = vrot.slane %v727, 7
      %v730 = vshll.u32 %v603, 16
      %v732 = vor.u32 %v729, %v730
      %v734 = vshrl.u32 %v604, 16
      %v736 = vrot.slane %v734, 7
      %v737 = vshll.u32 %v604, 16
      %v739 = vor.u32 %v736, %v737
      %v741 = vshrl.u32 %v605, 16
      %v743 = vrot.slane %v741, 7
      %v744 = vshll.u32 %v605, 16
      %v746 = vor.u32 %v743, %v744
      %v748 = vshrl.u32 %v606, 16
      %v750 = vrot.slane %v748, 7
      %v751 = vshll.u32 %v606, 16
      %v753 = vor.u32 %v750, %v751
      %v755 = vshrl.u32 %v607, 16
      %v757 = vrot.slane %v755, 7
      %v758 = vshll.u32 %v607, 16
      %v760 = vor.u32 %v757, %v758
      %v762 = vshrl.u32 %v608, 16
      %v764 = vrot.slane %v762, 7
      %v765 = vshll.u32 %v608, 16
      %v767 = vor.u32 %v764, %v765
      %v769 = vshrl.u32 %v609, 16
      %v771 = vrot.slane %v769, 7
      %v772 = vshll.u32 %v609, 16
      %v774 = vor.u32 %v771, %v772
      %v776 = vshrl.u32 %v610, 16
      %v778 = vrot.slane %v776, 7
      %v779 = vshll.u32 %v610, 16
      %v781 = vor.u32 %v778, %v779
      %v783 = vshrl.u32 %v611, 16
      %v785 = vrot.slane %v783, 7
      %v786 = vshll.u32 %v611, 16
      %v788 = vor.u32 %v785, %v786
      %v790 = vshrl.u32 %v612, 16
      %v792 = vrot.slane %v790, 7
      %v793 = vshll.u32 %v612, 16
      %v795 = vor.u32 %v792, %v793
      %v797 = vshrl.u32 %v613, 16
      %v799 = vrot.slane %v797, 7
      %v800 = vshll.u32 %v613, 16
      %v802 = vor.u32 %v799, %v800
      %v804 = vshrl.u32 %v614, 16
      %v806 = vrot.slane %v804, 7
      %v807 = vshll.u32 %v614, 16
      %v809 = vor.u32 %v806, %v807
      %v811 = vshrl.u32 %v615, 16
      %v813 = vrot.slane %v811, 7
      %v814 = vshll.u32 %v615, 16
      %v816 = vor.u32 %v813, %v814
      %v818 = vshrl.u32 %v616, 16
      %v820 = vrot.slane %v818, 7
      %v821 = vshll.u32 %v616, 16
      %v823 = vor.u32 %v820, %v821
      %v825 = vshrl.u32 %v617, 16
      %v827 = vrot.slane %v825, 7
      %v828 = vshll.u32 %v617, 16
      %v830 = vor.u32 %v827, %v828
      %v832 = vshrl.u32 %v618, 16
      %v834 = vrot.slane %v832, 7
      %v835 = vshll.u32 %v618, 16
      %v837 = vor.u32 %v834, %v835
      %vm854 = vcmask 261120
      %vm855 = vsmask.f32 7938
      %vm856 = vmand %vm854, %vm855
      %v857 = vld [vmem:[%s623] sm:$0xff]
      %v858 = vsel %vm856, %v732, %v857
      %859 = vst [vmem:[%s623] sm:$0xff] %v858
      %v860 = vld [vmem:[%s623 + $0x8] sm:$0xff]
      %v861 = vsel %vm856, %v739, %v860
      %862 = vst [vmem:[%s623 + $0x8] sm:$0xff] %v861
      %v863 = vld [vmem:[%s623 + $0x10] sm:$0xff]
      %v864 = vsel %vm856, %v746, %v863
      %865 = vst [vmem:[%s623 + $0x10] sm:$0xff] %v864
      %v866 = vld [vmem:[%s623 + $0x18] sm:$0xff]
      %v867 = vsel %vm856, %v753, %v866
      %868 = vst [vmem:[%s623 + $0x18] sm:$0xff] %v867
      %v869 = vld [vmem:[%s623 + $0x20] sm:$0xff]
      %v870 = vsel %vm856, %v760, %v869
      %871 = vst [vmem:[%s623 + $0x20] sm:$0xff] %v870
      %v872 = vld [vmem:[%s623 + $0x28] sm:$0xff]
      %v873 = vsel %vm856, %v767, %v872
      %874 = vst [vmem:[%s623 + $0x28] sm:$0xff] %v873
      %v875 = vld [vmem:[%s623 + $0x30] sm:$0xff]
      %v876 = vsel %vm856, %v774, %v875
      %877 = vst [vmem:[%s623 + $0x30] sm:$0xff] %v876
      %v878 = vld [vmem:[%s623 + $0x38] sm:$0xff]
      %v879 = vsel %vm856, %v781, %v878
      %880 = vst [vmem:[%s623 + $0x38] sm:$0xff] %v879
      %v881 = vld [vmem:[%s623 + $0x40] sm:$0xff]
      %v882 = vsel %vm856, %v788, %v881
      %883 = vst [vmem:[%s623 + $0x40] sm:$0xff] %v882
      %v884 = vld [vmem:[%s623 + $0x48] sm:$0xff]
      %v885 = vsel %vm856, %v795, %v884
      %886 = vst [vmem:[%s623 + $0x48] sm:$0xff] %v885
      %v887 = vld [vmem:[%s623 + $0x50] sm:$0xff]
      %v888 = vsel %vm856, %v802, %v887
      %889 = vst [vmem:[%s623 + $0x50] sm:$0xff] %v888
      %v890 = vld [vmem:[%s623 + $0x58] sm:$0xff]
      %v891 = vsel %vm856, %v809, %v890
      %892 = vst [vmem:[%s623 + $0x58] sm:$0xff] %v891
      %v893 = vld [vmem:[%s623 + $0x60] sm:$0xff]
      %v894 = vsel %vm856, %v816, %v893
      %895 = vst [vmem:[%s623 + $0x60] sm:$0xff] %v894
      %v896 = vld [vmem:[%s623 + $0x68] sm:$0xff]
      %v897 = vsel %vm856, %v823, %v896
      %898 = vst [vmem:[%s623 + $0x68] sm:$0xff] %v897
      %v899 = vld [vmem:[%s623 + $0x70] sm:$0xff]
      %v900 = vsel %vm856, %v830, %v899
      %901 = vst [vmem:[%s623 + $0x70] sm:$0xff] %v900
      %v902 = vld [vmem:[%s623 + $0x78] sm:$0xff]
      %v903 = vsel %vm856, %v837, %v902
      %904 = vst [vmem:[%s623 + $0x78] sm:$0xff] %v903
      %921 = vrot.lane.b32.xlu0 %v603, 32
      %v922 = vpop.permute.xlu0 %921
      %923 = vrot.lane.b32.xlu0 %v604, 32
      %v924 = vpop.permute.xlu0 %923
      %925 = vrot.lane.b32.xlu0 %v605, 32
      %v926 = vpop.permute.xlu0 %925
      %927 = vrot.lane.b32.xlu0 %v606, 32
      %v928 = vpop.permute.xlu0 %927
      %929 = vrot.lane.b32.xlu0 %v607, 32
      %v930 = vpop.permute.xlu0 %929
      %931 = vrot.lane.b32.xlu0 %v608, 32
      %v932 = vpop.permute.xlu0 %931
      %933 = vrot.lane.b32.xlu0 %v609, 32
      %v934 = vpop.permute.xlu0 %933
      %935 = vrot.lane.b32.xlu0 %v610, 32
      %v936 = vpop.permute.xlu0 %935
      %937 = vrot.lane.b32.xlu0 %v611, 32
      %v938 = vpop.permute.xlu0 %937
      %939 = vrot.lane.b32.xlu0 %v612, 32
      %v940 = vpop.permute.xlu0 %939
      %941 = vrot.lane.b32.xlu0 %v613, 32
      %v942 = vpop.permute.xlu0 %941
      %943 = vrot.lane.b32.xlu0 %v614, 32
      %v944 = vpop.permute.xlu0 %943
      %945 = vrot.lane.b32.xlu0 %v615, 32
      %v946 = vpop.permute.xlu0 %945
      %947 = vrot.lane.b32.xlu0 %v616, 32
      %v948 = vpop.permute.xlu0 %947
      %949 = vrot.lane.b32.xlu0 %v617, 32
      %v950 = vpop.permute.xlu0 %949
      %951 = vrot.lane.b32.xlu0 %v618, 32
      %v952 = vpop.permute.xlu0 %951
      %vm969 = vcmask 523520
      %970 = vst.msk [vmem:[%s623] sm:$0xff] %vm969, %v922
      %971 = vst.msk [vmem:[%s623 + $0x8] sm:$0xff] %vm969, %v924
      %972 = vst.msk [vmem:[%s623 + $0x10] sm:$0xff] %vm969, %v926
      %973 = vst.msk [vmem:[%s623 + $0x18] sm:$0xff] %vm969, %v928
      %974 = vst.msk [vmem:[%s623 + $0x20] sm:$0xff] %vm969, %v930
      %975 = vst.msk [vmem:[%s623 + $0x28] sm:$0xff] %vm969, %v932
      %976 = vst.msk [vmem:[%s623 + $0x30] sm:$0xff] %vm969, %v934
      %977 = vst.msk [vmem:[%s623 + $0x38] sm:$0xff] %vm969, %v936
      %978 = vst.msk [vmem:[%s623 + $0x40] sm:$0xff] %vm969, %v938
      %979 = vst.msk [vmem:[%s623 + $0x48] sm:$0xff] %vm969, %v940
      %980 = vst.msk [vmem:[%s623 + $0x50] sm:$0xff] %vm969, %v942
      %981 = vst.msk [vmem:[%s623 + $0x58] sm:$0xff] %vm969, %v944
      %982 = vst.msk [vmem:[%s623 + $0x60] sm:$0xff] %vm969, %v946
      %983 = vst.msk [vmem:[%s623 + $0x68] sm:$0xff] %vm969, %v948
      %984 = vst.msk [vmem:[%s623 + $0x70] sm:$0xff] %vm969, %v950
      %985 = vst.msk [vmem:[%s623 + $0x78] sm:$0xff] %vm969, %v952
      %v986 = vrot.slane %v730, 1
      %v987 = vor.u32 %v727, %v986
      %v988 = vrot.slane %v737, 1
      %v989 = vor.u32 %v734, %v988
      %v990 = vrot.slane %v744, 1
      %v991 = vor.u32 %v741, %v990
      %v992 = vrot.slane %v751, 1
      %v993 = vor.u32 %v748, %v992
      %v994 = vrot.slane %v758, 1
      %v995 = vor.u32 %v755, %v994
      %v996 = vrot.slane %v765, 1
      %v997 = vor.u32 %v762, %v996
      %v998 = vrot.slane %v772, 1
      %v999 = vor.u32 %v769, %v998
      %v1000 = vrot.slane %v779, 1
      %v1001 = vor.u32 %v776, %v1000
      %v1002 = vrot.slane %v786, 1
      %v1003 = vor.u32 %v783, %v1002
      %v1004 = vrot.slane %v793, 1
      %v1005 = vor.u32 %v790, %v1004
      %v1006 = vrot.slane %v800, 1
      %v1007 = vor.u32 %v797, %v1006
      %v1008 = vrot.slane %v807, 1
      %v1009 = vor.u32 %v804, %v1008
      %v1010 = vrot.slane %v814, 1
      %v1011 = vor.u32 %v811, %v1010
      %v1012 = vrot.slane %v821, 1
      %v1013 = vor.u32 %v818, %v1012
      %v1014 = vrot.slane %v828, 1
      %v1015 = vor.u32 %v825, %v1014
      %v1016 = vrot.slane %v835, 1
      %v1017 = vor.u32 %v832, %v1016
      %1018 = vrot.lane.b32.xlu0 %v987, 64
      %v1019 = vpop.permute.xlu0 %1018
      %1020 = vrot.lane.b32.xlu0 %v989, 64
      %v1021 = vpop.permute.xlu0 %1020
      %1022 = vrot.lane.b32.xlu0 %v991, 64
      %v1023 = vpop.permute.xlu0 %1022
      %1024 = vrot.lane.b32.xlu0 %v993, 64
      %v1025 = vpop.permute.xlu0 %1024
      %1026 = vrot.lane.b32.xlu0 %v995, 64
      %v1027 = vpop.permute.xlu0 %1026
      %1028 = vrot.lane.b32.xlu0 %v997, 64
      %v1029 = vpop.permute.xlu0 %1028
      %1030 = vrot.lane.b32.xlu0 %v999, 64
      %v1031 = vpop.permute.xlu0 %1030
      %1032 = vrot.lane.b32.xlu0 %v1001, 64
      %v1033 = vpop.permute.xlu0 %1032
      %1034 = vrot.lane.b32.xlu0 %v1003, 64
      %v1035 = vpop.permute.xlu0 %1034
      %1036 = vrot.lane.b32.xlu0 %v1005, 64
      %v1037 = vpop.permute.xlu0 %1036
      %1038 = vrot.lane.b32.xlu0 %v1007, 64
      %v1039 = vpop.permute.xlu0 %1038
      %1040 = vrot.lane.b32.xlu0 %v1009, 64
      %v1041 = vpop.permute.xlu0 %1040
      %1042 = vrot.lane.b32.xlu0 %v1011, 64
      %v1043 = vpop.permute.xlu0 %1042
      %1044 = vrot.lane.b32.xlu0 %v1013, 64
      %v1045 = vpop.permute.xlu0 %1044
      %1046 = vrot.lane.b32.xlu0 %v1015, 64
      %v1047 = vpop.permute.xlu0 %1046
      %1048 = vrot.lane.b32.xlu0 %v1017, 64
      %v1049 = vpop.permute.xlu0 %1048
      %vm1066 = vcmask 785920
      %vm1067 = vsmask.f32 7424
      %vm1068 = vmand %vm1066, %vm1067
      %v1069 = vld [vmem:[%s623] sm:$0xff]
      %v1070 = vsel %vm1068, %v1019, %v1069
      %1071 = vst [vmem:[%s623] sm:$0xff] %v1070
      %v1072 = vld [vmem:[%s623 + $0x8] sm:$0xff]
      %v1073 = vsel %vm1068, %v1021, %v1072
      %1074 = vst [vmem:[%s623 + $0x8] sm:$0xff] %v1073
      %v1075 = vld [vmem:[%s623 + $0x10] sm:$0xff]
      %v1076 = vsel %vm1068, %v1023, %v1075
      %1077 = vst [vmem:[%s623 + $0x10] sm:$0xff] %v1076
      %v1078 = vld [vmem:[%s623 + $0x18] sm:$0xff]
      %v1079 = vsel %vm1068, %v1025, %v1078
      %1080 = vst [vmem:[%s623 + $0x18] sm:$0xff] %v1079
      %v1081 = vld [vmem:[%s623 + $0x20] sm:$0xff]
      %v1082 = vsel %vm1068, %v1027, %v1081
      %1083 = vst [vmem:[%s623 + $0x20] sm:$0xff] %v1082
      %v1084 = vld [vmem:[%s623 + $0x28] sm:$0xff]
      %v1085 = vsel %vm1068, %v1029, %v1084
      %1086 = vst [vmem:[%s623 + $0x28] sm:$0xff] %v1085
      %v1087 = vld [vmem:[%s623 + $0x30] sm:$0xff]
      %v1088 = vsel %vm1068, %v1031, %v1087
      %1089 = vst [vmem:[%s623 + $0x30] sm:$0xff] %v1088
      %v1090 = vld [vmem:[%s623 + $0x38] sm:$0xff]
      %v1091 = vsel %vm1068, %v1033, %v1090
      %1092 = vst [vmem:[%s623 + $0x38] sm:$0xff] %v1091
      %v1093 = vld [vmem:[%s623 + $0x40] sm:$0xff]
      %v1094 = vsel %vm1068, %v1035, %v1093
      %1095 = vst [vmem:[%s623 + $0x40] sm:$0xff] %v1094
      %v1096 = vld [vmem:[%s623 + $0x48] sm:$0xff]
      %v1097 = vsel %vm1068, %v1037, %v1096
      %1098 = vst [vmem:[%s623 + $0x48] sm:$0xff] %v1097
      %v1099 = vld [vmem:[%s623 + $0x50] sm:$0xff]
      %v1100 = vsel %vm1068, %v1039, %v1099
      %1101 = vst [vmem:[%s623 + $0x50] sm:$0xff] %v1100
      %v1102 = vld [vmem:[%s623 + $0x58] sm:$0xff]
      %v1103 = vsel %vm1068, %v1041, %v1102
      %1104 = vst [vmem:[%s623 + $0x58] sm:$0xff] %v1103
      %v1105 = vld [vmem:[%s623 + $0x60] sm:$0xff]
      %v1106 = vsel %vm1068, %v1043, %v1105
      %1107 = vst [vmem:[%s623 + $0x60] sm:$0xff] %v1106
      %v1108 = vld [vmem:[%s623 + $0x68] sm:$0xff]
      %v1109 = vsel %vm1068, %v1045, %v1108
      %1110 = vst [vmem:[%s623 + $0x68] sm:$0xff] %v1109
      %v1111 = vld [vmem:[%s623 + $0x70] sm:$0xff]
      %v1112 = vsel %vm1068, %v1047, %v1111
      %1113 = vst [vmem:[%s623 + $0x70] sm:$0xff] %v1112
      %v1114 = vld [vmem:[%s623 + $0x78] sm:$0xff]
      %v1115 = vsel %vm1068, %v1049, %v1114
      %1116 = vst [vmem:[%s623 + $0x78] sm:$0xff] %v1115
      %v1117 = vld [vmem:[%s4] sm:$0x1]
      %v1118 = vld [vmem:[#allocation2] sm:$0xff]
      %v1119 = vld [vmem:[#allocation2 + $0x8] sm:$0xff]
      %v1120 = vld [vmem:[#allocation2 + $0x10] sm:$0xff]
      %v1121 = vld [vmem:[#allocation2 + $0x18] sm:$0xff]
      %v1122 = vld [vmem:[#allocation2 + $0x20] sm:$0xff]
      %v1123 = vld [vmem:[#allocation2 + $0x28] sm:$0xff]
      %v1124 = vld [vmem:[#allocation2 + $0x30] sm:$0xff]
      %v1125 = vld [vmem:[#allocation2 + $0x38] sm:$0xff]
      %v1126 = vld [vmem:[%s3] sm:$0xf]
      %v1127 = vld [vmem:[%s3 + $0x4] sm:$0xf]
      %v1128 = vld [vmem:[%s3 + $0x8] sm:$0xf]
      %v1129 = vld [vmem:[%s3 + $0xc] sm:$0xf]
      %v1130 = vld [vmem:[%s3 + $0x10] sm:$0xf]
      %v1131 = vld [vmem:[%s3 + $0x14] sm:$0xf]
      %v1132 = vld [vmem:[%s3 + $0x18] sm:$0xf]
      %v1133 = vld [vmem:[%s3 + $0x1c] sm:$0xf]
      %v1134 = vld [vmem:[%s3 + $0x20] sm:$0xf]
      %v1135 = vld [vmem:[%s3 + $0x24] sm:$0xf]
      %v1136 = vld [vmem:[%s3 + $0x28] sm:$0xf]
      %v1137 = vld [vmem:[%s3 + $0x2c] sm:$0xf]
      %s1138 = sadd.s32 0, 1
      %s1139 = smul.addr %s1138, 8
      %s1140 = scalar_lea.vmem [#allocation2], %s1139
      %v1141 = vld [vmem:[%s1140] sm:$0xff]
      %v1142 = vld [vmem:[%s1140 + $0x8] sm:$0xff]
      %v1143 = vld [vmem:[%s1140 + $0x10] sm:$0xff]
      %v1144 = vld [vmem:[%s1140 + $0x18] sm:$0xff]
      %v1145 = vld [vmem:[%s1140 + $0x20] sm:$0xff]
      %v1146 = vld [vmem:[%s1140 + $0x28] sm:$0xff]
      %v1147 = vld [vmem:[%s1140 + $0x30] sm:$0xff]
      %v1148 = vld [vmem:[%s1140 + $0x38] sm:$0xff]
      %s1149 = scalar_lea.vmem %s3, 48
      %v1150 = vld [vmem:[%s1149] sm:$0xf]
      %v1151 = vld [vmem:[%s1149 + $0x4] sm:$0xf]
      %v1152 = vld [vmem:[%s1149 + $0x8] sm:$0xf]
      %v1153 = vld [vmem:[%s1149 + $0xc] sm:$0xf]
      %v1154 = vld [vmem:[%s1149 + $0x10] sm:$0xf]
      %v1155 = vld [vmem:[%s1149 + $0x14] sm:$0xf]
      %v1156 = vld [vmem:[%s1149 + $0x18] sm:$0xf]
      %v1157 = vld [vmem:[%s1149 + $0x1c] sm:$0xf]
      %v1158 = vld [vmem:[%s1149 + $0x20] sm:$0xf]
      %v1159 = vld [vmem:[%s1149 + $0x24] sm:$0xf]
      %v1160 = vld [vmem:[%s1149 + $0x28] sm:$0xf]
      %v1161 = vld [vmem:[%s1149 + $0x2c] sm:$0xf]
      %v1174 = vunpack.c.l.b16 %v1150
      %v1175 = vunpack.c.l.b16 %v1151
      %v1176 = vunpack.c.l.b16 %v1152
      %v1177 = vunpack.c.l.b16 %v1153
      %v1178 = vunpack.c.l.b16 %v1154
      %v1179 = vunpack.c.l.b16 %v1155
      %v1180 = vunpack.c.l.b16 %v1156
      %v1181 = vunpack.c.l.b16 %v1157
      %v1182 = vunpack.c.l.b16 %v1158
      %v1183 = vunpack.c.l.b16 %v1159
      %v1184 = vunpack.c.l.b16 %v1160
      %v1185 = vunpack.c.l.b16 %v1161
      %v1186 = vpack.c.b16 %v1175, %v1174
      %v1187 = vpack.c.b16 %v1177, %v1176
      %v1188 = vpack.c.b16 %v1179, %v1178
      %v1189 = vpack.c.b16 %v1181, %v1180
      %v1190 = vpack.c.b16 %v1183, %v1182
      %v1191 = vpack.c.b16 %v1185, %v1184
      %v1199 = vsel %vm619, %v1141, 0
      %v1202 = vsel %vm619, %v1142, 0
      %v1205 = vsel %vm619, %v1143, 0
      %v1208 = vsel %vm619, %v1144, 0
      %v1211 = vsel %vm619, %v1145, 0
      %v1214 = vsel %vm619, %v1146, 0
      %v1217 = vsel %vm619, %v1147, 0
      %v1220 = vsel %vm619, %v1148, 0
      %1222 = vmatprep.subr.bf16.mxu0 0
      %1223 = vmatpush1.bf16.msra.mxu0 %v1186
      %1224 = vmatprep.subr.bf16.mxu0 0
      %1225 = vmatpush1.bf16.msra.mxu0 %v1187
      %1226 = vmatprep.subr.bf16.mxu0 0
      %1227 = vmatpush1.bf16.msra.mxu0 %v1188
      %1228 = vmatprep.subr.bf16.mxu0 0
      %1229 = vmatpush1.bf16.msra.mxu0 %v1189
      %1230 = vmatprep.subr.bf16.mxu0 0
      %1231 = vmatpush1.bf16.msra.mxu0 %v1190
      %1232 = vmatprep.subr.bf16.mxu0 0
      %1233 = vmatpush1.bf16.msra.mxu0 %v1191
      %1234 = vmatprep.subr.bf16.mxu0 0
      %1235 = vmatpush1.bf16.msra.mxu0 0
      %1236 = vmatprep.subr.bf16.mxu0 0
      %1237 = vmatpush1.bf16.msra.mxu0 0
      %1238 = vmatprep.subr.bf16.mxu0 0
      %1239 = vmatpush1.bf16.msra.mxu0 0
      %1240 = vmatprep.subr.bf16.mxu0 0
      %1241 = vmatpush1.bf16.msra.mxu0 0
      %1242 = vmatprep.subr.bf16.mxu0 0
      %1243 = vmatpush1.bf16.msra.mxu0 0
      %1244 = vmatprep.subr.bf16.mxu0 0
      %1245 = vmatpush1.bf16.msra.mxu0 0
      %1246 = vmatprep.subr.bf16.mxu0 0
      %1247 = vmatpush1.bf16.msra.mxu0 0
      %1248 = vmatprep.subr.bf16.mxu0 0
      %1249 = vmatpush1.bf16.msra.mxu0 0
      %1250 = vmatprep.subr.bf16.mxu0 0
      %1251 = vmatpush1.bf16.msra.mxu0 0
      %1252 = vmatprep.subr.bf16.mxu0 0
      %1253 = vmatpush1.bf16.msra.mxu0 0
      %1254 = vmatprep.mubr.bf16.mxu0 0
      %1255 = vmatmul.mubr.bf16.gmra.mrb[0].mxu0 %v1199
      %v1256 = vpop.f32.mrb[0].mxu0
      %v1257 = vadd.f32 0.0, %v1256
      %v1258 = vpop.f32.mrb[0].mxu0
      %v1259 = vpop.f32.mrb[0].mxu0
      %v1260 = vadd.f32 0.0, %v1259
      %v1261 = vpop.f32.mrb[0].mxu0
      %1262 = vmatprep.mubr.bf16.mxu0 0
      %1263 = vmatmul.mubr.bf16.gmra.mrb[0].mxu0 %v1202
      %v1264 = vpop.f32.mrb[0].mxu0
      %v1265 = vadd.f32 0.0, %v1264
      %v1266 = vpop.f32.mrb[0].mxu0
      %v1267 = vpop.f32.mrb[0].mxu0
      %v1268 = vadd.f32 0.0, %v1267
      %v1269 = vpop.f32.mrb[0].mxu0
      %1270 = vmatprep.mubr.bf16.mxu0 0
      %1271 = vmatmul.mubr.bf16.gmra.mrb[0].mxu0 %v1205
      %v1272 = vpop.f32.mrb[0].mxu0
      %v1273 = vadd.f32 0.0, %v1272
      %v1274 = vpop.f32.mrb[0].mxu0
      %v1275 = vpop.f32.mrb[0].mxu0
      %v1276 = vadd.f32 0.0, %v1275
      %v1277 = vpop.f32.mrb[0].mxu0
      %1278 = vmatprep.mubr.bf16.mxu0 0
      %1279 = vmatmul.mubr.bf16.gmra.mrb[0].mxu0 %v1208
      %v1280 = vpop.f32.mrb[0].mxu0
      %v1281 = vadd.f32 0.0, %v1280
      %v1282 = vpop.f32.mrb[0].mxu0
      %v1283 = vpop.f32.mrb[0].mxu0
      %v1284 = vadd.f32 0.0, %v1283
      %v1285 = vpop.f32.mrb[0].mxu0
      %1286 = vmatprep.mubr.bf16.mxu0 0
      %1287 = vmatmul.mubr.bf16.gmra.mrb[0].mxu0 %v1211
      %v1288 = vpop.f32.mrb[0].mxu0
      %v1289 = vadd.f32 0.0, %v1288
      %v1290 = vpop.f32.mrb[0].mxu0
      %v1291 = vpop.f32.mrb[0].mxu0
      %v1292 = vadd.f32 0.0, %v1291
      %v1293 = vpop.f32.mrb[0].mxu0
      %1294 = vmatprep.mubr.bf16.mxu0 0
      %1295 = vmatmul.mubr.bf16.gmra.mrb[0].mxu0 %v1214
      %v1296 = vpop.f32.mrb[0].mxu0
      %v1297 = vadd.f32 0.0, %v1296
      %v1298 = vpop.f32.mrb[0].mxu0
      %v1299 = vpop.f32.mrb[0].mxu0
      %v1300 = vadd.f32 0.0, %v1299
      %v1301 = vpop.f32.mrb[0].mxu0
      %1302 = vmatprep.mubr.bf16.mxu0 0
      %1303 = vmatmul.mubr.bf16.gmra.mrb[0].mxu0 %v1217
      %v1304 = vpop.f32.mrb[0].mxu0
      %v1305 = vadd.f32 0.0, %v1304
      %v1306 = vpop.f32.mrb[0].mxu0
      %v1307 = vpop.f32.mrb[0].mxu0
      %v1308 = vadd.f32 0.0, %v1307
      %v1309 = vpop.f32.mrb[0].mxu0
      %1310 = vmatprep.mubr.bf16.mxu0 0
      %1311 = vmatmul.mubr.bf16.gmra.mrb[0].mxu0 %v1220
      %v1312 = vpop.f32.mrb[0].mxu0
      %v1313 = vadd.f32 0.0, %v1312
      %v1314 = vpop.f32.mrb[0].mxu0
      %v1315 = vpop.f32.mrb[0].mxu0
      %v1316 = vadd.f32 0.0, %v1315
      %v1317 = vpop.f32.mrb[0].mxu0
      %1318 = vdwg.mxu0
      %v1331 = vunpack.c.l.b16 %v1126
      %v1332 = vunpack.c.l.b16 %v1127
      %v1333 = vunpack.c.l.b16 %v1128
      %v1334 = vunpack.c.l.b16 %v1129
      %v1335 = vunpack.c.l.b16 %v1130
      %v1336 = vunpack.c.l.b16 %v1131
      %v1337 = vunpack.c.l.b16 %v1132
      %v1338 = vunpack.c.l.b16 %v1133
      %v1339 = vunpack.c.l.b16 %v1134
      %v1340 = vunpack.c.l.b16 %v1135
      %v1341 = vunpack.c.l.b16 %v1136
      %v1342 = vunpack.c.l.b16 %v1137
      %v1343 = vpack.c.b16 %v1332, %v1331
      %v1344 = vpack.c.b16 %v1334, %v1333
      %v1345 = vpack.c.b16 %v1336, %v1335
      %v1346 = vpack.c.b16 %v1338, %v1337
      %v1347 = vpack.c.b16 %v1340, %v1339
      %v1348 = vpack.c.b16 %v1342, %v1341
      %v1356 = vsel %vm619, %v1118, 0
      %v1359 = vsel %vm619, %v1119, 0
      %v1362 = vsel %vm619, %v1120, 0
      %v1365 = vsel %vm619, %v1121, 0
      %v1368 = vsel %vm619, %v1122, 0
      %v1371 = vsel %vm619, %v1123, 0
      %v1374 = vsel %vm619, %v1124, 0
      %v1377 = vsel %vm619, %v1125, 0
      %1379 = vmatprep.subr.bf16.mxu0 0
      %1380 = vmatpush1.bf16.msra.mxu0 %v1343
      %1381 = vmatprep.subr.bf16.mxu0 0
      %1382 = vmatpush1.bf16.msra.mxu0 %v1344
      %1383 = vmatprep.subr.bf16.mxu0 0
      %1384 = vmatpush1.bf16.msra.mxu0 %v1345
      %1385 = vmatprep.subr.bf16.mxu0 0
      %1386 = vmatpush1.bf16.msra.mxu0 %v1346
      %1387 = vmatprep.subr.bf16.mxu0 0
      %1388 = vmatpush1.bf16.msra.mxu0 %v1347
      %1389 = vmatprep.subr.bf16.mxu0 0
      %1390 = vmatpush1.bf16.msra.mxu0 %v1348
      %1391 = vmatprep.subr.bf16.mxu0 0
      %1392 = vmatpush1.bf16.msra.mxu0 0
      %1393 = vmatprep.subr.bf16.mxu0 0
      %1394 = vmatpush1.bf16.msra.mxu0 0
      %1395 = vmatprep.subr.bf16.mxu0 0
      %1396 = vmatpush1.bf16.msra.mxu0 0
      %1397 = vmatprep.subr.bf16.mxu0 0
      %1398 = vmatpush1.bf16.msra.mxu0 0
      %1399 = vmatprep.subr.bf16.mxu0 0
      %1400 = vmatpush1.bf16.msra.mxu0 0
      %1401 = vmatprep.subr.bf16.mxu0 0
      %1402 = vmatpush1.bf16.msra.mxu0 0
      %1403 = vmatprep.subr.bf16.mxu0 0
      %1404 = vmatpush1.bf16.msra.mxu0 0
      %1405 = vmatprep.subr.bf16.mxu0 0
      %1406 = vmatpush1.bf16.msra.mxu0 0
      %1407 = vmatprep.subr.bf16.mxu0 0
      %1408 = vmatpush1.bf16.msra.mxu0 0
      %1409 = vmatprep.subr.bf16.mxu0 0
      %1410 = vmatpush1.bf16.msra.mxu0 0
      %1411 = vmatprep.mubr.bf16.mxu0 0
      %1412 = vmatmul.mubr.bf16.gmra.mrb[0].mxu0 %v1356
      %v1413 = vpop.f32.mrb[0].mxu0
      %v1414 = vadd.f32 %v1257, %v1413
      %v1415 = vpop.f32.mrb[0].mxu0
      %v1416 = vpop.f32.mrb[0].mxu0
      %v1417 = vadd.f32 %v1260, %v1416
      %v1418 = vpop.f32.mrb[0].mxu0
      %1419 = vmatprep.mubr.bf16.mxu0 0
      %1420 = vmatmul.mubr.bf16.gmra.mrb[0].mxu0 %v1359
      %v1421 = vpop.f32.mrb[0].mxu0
      %v1422 = vadd.f32 %v1265, %v1421
      %v1423 = vpop.f32.mrb[0].mxu0
      %v1424 = vpop.f32.mrb[0].mxu0
      %v1425 = vadd.f32 %v1268, %v1424
      %v1426 = vpop.f32.mrb[0].mxu0
      %1427 = vmatprep.mubr.bf16.mxu0 0
      %1428 = vmatmul.mubr.bf16.gmra.mrb[0].mxu0 %v1362
      %v1429 = vpop.f32.mrb[0].mxu0
      %v1430 = vadd.f32 %v1273, %v1429
      %v1431 = vpop.f32.mrb[0].mxu0
      %v1432 = vpop.f32.mrb[0].mxu0
      %v1433 = vadd.f32 %v1276, %v1432
      %v1434 = vpop.f32.mrb[0].mxu0
      %1435 = vmatprep.mubr.bf16.mxu0 0
      %1436 = vmatmul.mubr.bf16.gmra.mrb[0].mxu0 %v1365
      %v1437 = vpop.f32.mrb[0].mxu0
      %v1438 = vadd.f32 %v1281, %v1437
      %v1439 = vpop.f32.mrb[0].mxu0
      %v1440 = vpop.f32.mrb[0].mxu0
      %v1441 = vadd.f32 %v1284, %v1440
      %v1442 = vpop.f32.mrb[0].mxu0
      %1443 = vmatprep.mubr.bf16.mxu0 0
      %1444 = vmatmul.mubr.bf16.gmra.mrb[0].mxu0 %v1368
      %v1445 = vpop.f32.mrb[0].mxu0
      %v1446 = vadd.f32 %v1289, %v1445
      %v1447 = vpop.f32.mrb[0].mxu0
      %v1448 = vpop.f32.mrb[0].mxu0
      %v1449 = vadd.f32 %v1292, %v1448
      %v1450 = vpop.f32.mrb[0].mxu0
      %1451 = vmatprep.mubr.bf16.mxu0 0
      %1452 = vmatmul.mubr.bf16.gmra.mrb[0].mxu0 %v1371
      %v1453 = vpop.f32.mrb[0].mxu0
      %v1454 = vadd.f32 %v1297, %v1453
      %v1455 = vpop.f32.mrb[0].mxu0
      %v1456 = vpop.f32.mrb[0].mxu0
      %v1457 = vadd.f32 %v1300, %v1456
      %v1458 = vpop.f32.mrb[0].mxu0
      %1459 = vmatprep.mubr.bf16.mxu0 0
      %1460 = vmatmul.mubr.bf16.gmra.mrb[0].mxu0 %v1374
      %v1461 = vpop.f32.mrb[0].mxu0
      %v1462 = vadd.f32 %v1305, %v1461
      %v1463 = vpop.f32.mrb[0].mxu0
      %v1464 = vpop.f32.mrb[0].mxu0
      %v1465 = vadd.f32 %v1308, %v1464
      %v1466 = vpop.f32.mrb[0].mxu0
      %1467 = vmatprep.mubr.bf16.mxu0 0
      %1468 = vmatmul.mubr.bf16.gmra.mrb[0].mxu0 %v1377
      %v1469 = vpop.f32.mrb[0].mxu0
      %v1470 = vadd.f32 %v1313, %v1469
      %v1471 = vpop.f32.mrb[0].mxu0
      %v1472 = vpop.f32.mrb[0].mxu0
      %v1473 = vadd.f32 %v1316, %v1472
      %v1474 = vpop.f32.mrb[0].mxu0
      %1475 = vdwg.mxu0
      %s1476 = sadd.s32 0, 2
      %s1477 = smul.addr %s1476, 8
      %s1478 = scalar_lea.vmem [#allocation2], %s1477
      %v1479 = vld [vmem:[%s1478] sm:$0xff]
      %v1480 = vld [vmem:[%s1478 + $0x8] sm:$0xff]
      %v1481 = vld [vmem:[%s1478 + $0x10] sm:$0xff]
      %v1482 = vld [vmem:[%s1478 + $0x18] sm:$0xff]
      %v1483 = vld [vmem:[%s1478 + $0x20] sm:$0xff]
      %v1484 = vld [vmem:[%s1478 + $0x28] sm:$0xff]
      %v1485 = vld [vmem:[%s1478 + $0x30] sm:$0xff]
      %v1486 = vld [vmem:[%s1478 + $0x38] sm:$0xff]
      %s1487 = scalar_lea.vmem %s3, 96
      %v1488 = vld [vmem:[%s1487] sm:$0xf]
      %v1489 = vld [vmem:[%s1487 + $0x4] sm:$0xf]
      %v1490 = vld [vmem:[%s1487 + $0x8] sm:$0xf]
      %v1491 = vld [vmem:[%s1487 + $0xc] sm:$0xf]
      %v1492 = vld [vmem:[%s1487 + $0x10] sm:$0xf]
      %v1493 = vld [vmem:[%s1487 + $0x14] sm:$0xf]
      %v1494 = vld [vmem:[%s1487 + $0x18] sm:$0xf]
      %v1495 = vld [vmem:[%s1487 + $0x1c] sm:$0xf]
      %v1496 = vld [vmem:[%s1487 + $0x20] sm:$0xf]
      %v1497 = vld [vmem:[%s1487 + $0x24] sm:$0xf]
      %v1498 = vld [vmem:[%s1487 + $0x28] sm:$0xf]
      %v1499 = vld [vmem:[%s1487 + $0x2c] sm:$0xf]
      %v1512 = vunpack.c.l.b16 %v1488
      %v1513 = vunpack.c.l.b16 %v1489
      %v1514 = vunpack.c.l.b16 %v1490
      %v1515 = vunpack.c.l.b16 %v1491
      %v1516 = vunpack.c.l.b16 %v1492
      %v1517 = vunpack.c.l.b16 %v1493
      %v1518 = vunpack.c.l.b16 %v1494
      %v1519 = vunpack.c.l.b16 %v1495
      %v1520 = vunpack.c.l.b16 %v1496
      %v1521 = vunpack.c.l.b16 %v1497
      %v1522 = vunpack.c.l.b16 %v1498
      %v1523 = vunpack.c.l.b16 %v1499
      %v1524 = vpack.c.b16 %v1513, %v1512
      %v1525 = vpack.c.b16 %v1515, %v1514
      %v1526 = vpack.c.b16 %v1517, %v1516
      %v1527 = vpack.c.b16 %v1519, %v1518
      %v1528 = vpack.c.b16 %v1521, %v1520
      %v1529 = vpack.c.b16 %v1523, %v1522
      %v1537 = vsel %vm619, %v1479, 0
      %v1540 = vsel %vm619, %v1480, 0
      %v1543 = vsel %vm619, %v1481, 0
      %v1546 = vsel %vm619, %v1482, 0
      %v1549 = vsel %vm619, %v1483, 0
      %v1552 = vsel %vm619, %v1484, 0
      %v1555 = vsel %vm619, %v1485, 0
      %v1558 = vsel %vm619, %v1486, 0
      %1560 = vmatprep.subr.bf16.mxu0 0
      %1561 = vmatpush1.bf16.msra.mxu0 %v1524
      %1562 = vmatprep.subr.bf16.mxu0 0
      %1563 = vmatpush1.bf16.msra.mxu0 %v1525
      %1564 = vmatprep.subr.bf16.mxu0 0
      %1565 = vmatpush1.bf16.msra.mxu0 %v1526
      %1566 = vmatprep.subr.bf16.mxu0 0
      %1567 = vmatpush1.bf16.msra.mxu0 %v1527
      %1568 = vmatprep.subr.bf16.mxu0 0
      %1569 = vmatpush1.bf16.msra.mxu0 %v1528
      %1570 = vmatprep.subr.bf16.mxu0 0
      %1571 = vmatpush1.bf16.msra.mxu0 %v1529
      %1572 = vmatprep.subr.bf16.mxu0 0
      %1573 = vmatpush1.bf16.msra.mxu0 0
      %1574 = vmatprep.subr.bf16.mxu0 0
      %1575 = vmatpush1.bf16.msra.mxu0 0
      %1576 = vmatprep.subr.bf16.mxu0 0
      %1577 = vmatpush1.bf16.msra.mxu0 0
      %1578 = vmatprep.subr.bf16.mxu0 0
      %1579 = vmatpush1.bf16.msra.mxu0 0
      %1580 = vmatprep.subr.bf16.mxu0 0
      %1581 = vmatpush1.bf16.msra.mxu0 0
      %1582 = vmatprep.subr.bf16.mxu0 0
      %1583 = vmatpush1.bf16.msra.mxu0 0
      %1584 = vmatprep.subr.bf16.mxu0 0
      %1585 = vmatpush1.bf16.msra.mxu0 0
      %1586 = vmatprep.subr.bf16.mxu0 0
      %1587 = vmatpush1.bf16.msra.mxu0 0
      %1588 = vmatprep.subr.bf16.mxu0 0
      %1589 = vmatpush1.bf16.msra.mxu0 0
      %1590 = vmatprep.subr.bf16.mxu0 0
      %1591 = vmatpush1.bf16.msra.mxu0 0
      %1592 = vmatprep.mubr.bf16.mxu0 0
      %1593 = vmatmul.mubr.bf16.gmra.mrb[0].mxu0 %v1537
      %v1594 = vpop.f32.mrb[0].mxu0
      %v1595 = vadd.f32 0.0, %v1594
      %v1596 = vpop.f32.mrb[0].mxu0
      %v1597 = vpop.f32.mrb[0].mxu0
      %v1598 = vadd.f32 0.0, %v1597
      %v1599 = vpop.f32.mrb[0].mxu0
      %1600 = vmatprep.mubr.bf16.mxu0 0
      %1601 = vmatmul.mubr.bf16.gmra.mrb[0].mxu0 %v1540
      %v1602 = vpop.f32.mrb[0].mxu0
      %v1603 = vadd.f32 0.0, %v1602
      %v1604 = vpop.f32.mrb[0].mxu0
      %v1605 = vpop.f32.mrb[0].mxu0
      %v1606 = vadd.f32 0.0, %v1605
      %v1607 = vpop.f32.mrb[0].mxu0
      %1608 = vmatprep.mubr.bf16.mxu0 0
      %1609 = vmatmul.mubr.bf16.gmra.mrb[0].mxu0 %v1543
      %v1610 = vpop.f32.mrb[0].mxu0
      %v1611 = vadd.f32 0.0, %v1610
      %v1612 = vpop.f32.mrb[0].mxu0
      %v1613 = vpop.f32.mrb[0].mxu0
      %v1614 = vadd.f32 0.0, %v1613
      %v1615 = vpop.f32.mrb[0].mxu0
      %1616 = vmatprep.mubr.bf16.mxu0 0
      %1617 = vmatmul.mubr.bf16.gmra.mrb[0].mxu0 %v1546
      %v1618 = vpop.f32.mrb[0].mxu0
      %v1619 = vadd.f32 0.0, %v1618
      %v1620 = vpop.f32.mrb[0].mxu0
      %v1621 = vpop.f32.mrb[0].mxu0
      %v1622 = vadd.f32 0.0, %v1621
      %v1623 = vpop.f32.mrb[0].mxu0
      %1624 = vmatprep.mubr.bf16.mxu0 0
      %1625 = vmatmul.mubr.bf16.gmra.mrb[0].mxu0 %v1549
      %v1626 = vpop.f32.mrb[0].mxu0
      %v1627 = vadd.f32 0.0, %v1626
      %v1628 = vpop.f32.mrb[0].mxu0
      %v1629 = vpop.f32.mrb[0].mxu0
      %v1630 = vadd.f32 0.0, %v1629
      %v1631 = vpop.f32.mrb[0].mxu0
      %1632 = vmatprep.mubr.bf16.mxu0 0
      %1633 = vmatmul.mubr.bf16.gmra.mrb[0].mxu0 %v1552
      %v1634 = vpop.f32.mrb[0].mxu0
      %v1635 = vadd.f32 0.0, %v1634
      %v1636 = vpop.f32.mrb[0].mxu0
      %v1637 = vpop.f32.mrb[0].mxu0
      %v1638 = vadd.f32 0.0, %v1637
      %v1639 = vpop.f32.mrb[0].mxu0
      %1640 = vmatprep.mubr.bf16.mxu0 0
      %1641 = vmatmul.mubr.bf16.gmra.mrb[0].mxu0 %v1555
      %v1642 = vpop.f32.mrb[0].mxu0
      %v1643 = vadd.f32 0.0, %v1642
      %v1644 = vpop.f32.mrb[0].mxu0
      %v1645 = vpop.f32.mrb[0].mxu0
      %v1646 = vadd.f32 0.0, %v1645
      %v1647 = vpop.f32.mrb[0].mxu0
      %1648 = vmatprep.mubr.bf16.mxu0 0
      %1649 = vmatmul.mubr.bf16.gmra.mrb[0].mxu0 %v1558
      %v1650 = vpop.f32.mrb[0].mxu0
      %v1651 = vadd.f32 0.0, %v1650
      %v1652 = vpop.f32.mrb[0].mxu0
      %v1653 = vpop.f32.mrb[0].mxu0
      %v1654 = vadd.f32 0.0, %v1653
      %v1655 = vpop.f32.mrb[0].mxu0
      %1656 = vdwg.mxu0
      %v1657 = vadd.f32 %v1414, %v1595
      %v1658 = vadd.f32 %v1417, %v1598
      %v1659 = vadd.f32 %v1422, %v1603
      %v1660 = vadd.f32 %v1425, %v1606
      %v1661 = vadd.f32 %v1430, %v1611
      %v1662 = vadd.f32 %v1433, %v1614
      %v1663 = vadd.f32 %v1438, %v1619
      %v1664 = vadd.f32 %v1441, %v1622
      %v1665 = vadd.f32 %v1446, %v1627
      %v1666 = vadd.f32 %v1449, %v1630
      %v1667 = vadd.f32 %v1454, %v1635
      %v1668 = vadd.f32 %v1457, %v1638
      %v1669 = vadd.f32 %v1462, %v1643
      %v1670 = vadd.f32 %v1465, %v1646
      %v1671 = vadd.f32 %v1470, %v1651
      %v1672 = vadd.f32 %v1473, %v1654
      %s1673 = smul.u32 0, 2
      %s1674 = smul.addr %s1673, 4
      %s1675 = scalar_lea.vmem %s219, %s1674
      %v1676 = vld [vmem:[%s1675] sm:$0xf]
      %v1677 = vld [vmem:[%s1675 + $0x4] sm:$0xf]
      %v1678 = vld [vmem:[%s1675 + $0x8] sm:$0xf]
      %v1679 = vld [vmem:[%s1675 + $0xc] sm:$0xf]
      %v1680 = vld [vmem:[%s1675 + $0x10] sm:$0xf]
      %v1681 = vld [vmem:[%s1675 + $0x14] sm:$0xf]
      %v1682 = vld [vmem:[%s1675 + $0x18] sm:$0xf]
      %v1683 = vld [vmem:[%s1675 + $0x1c] sm:$0xf]
      %v1684 = vld [vmem:[%s1675 + $0x20] sm:$0xf]
      %v1685 = vld [vmem:[%s1675 + $0x24] sm:$0xf]
      %v1686 = vld [vmem:[%s1675 + $0x28] sm:$0xf]
      %v1687 = vld [vmem:[%s1675 + $0x2c] sm:$0xf]
      %v1688 = vld [vmem:[%s1675 + $0x30] sm:$0xf]
      %v1689 = vld [vmem:[%s1675 + $0x34] sm:$0xf]
      %v1690 = vld [vmem:[%s1675 + $0x38] sm:$0xf]
      %v1691 = vld [vmem:[%s1675 + $0x3c] sm:$0xf]
      %v1692 = vunpack.c.l.bf16 %v1676
      %v1693 = vunpack.c.l.bf16 %v1677
      %v1694 = vunpack.c.l.bf16 %v1678
      %v1695 = vunpack.c.l.bf16 %v1679
      %v1696 = vunpack.c.l.bf16 %v1680
      %v1697 = vunpack.c.l.bf16 %v1681
      %v1698 = vunpack.c.l.bf16 %v1682
      %v1699 = vunpack.c.l.bf16 %v1683
      %v1700 = vunpack.c.l.bf16 %v1684
      %v1701 = vunpack.c.l.bf16 %v1685
      %v1702 = vunpack.c.l.bf16 %v1686
      %v1703 = vunpack.c.l.bf16 %v1687
      %v1704 = vunpack.c.l.bf16 %v1688
      %v1705 = vunpack.c.l.bf16 %v1689
      %v1706 = vunpack.c.l.bf16 %v1690
      %v1707 = vunpack.c.l.bf16 %v1691
      %v1709 = vlaneseq
      %v1710 = vshrl.u32 %v1709, 7
      %v1711 = vsub.s32 0, %v1710
      %v1712 = vrot.slane %v1117, %v1711
      %v1714 = vadd.f32 %v1657, %v1712
      %v1715 = vadd.f32 %v1658, %v1712
      %v1716 = vadd.f32 %v1659, %v1712
      %v1717 = vadd.f32 %v1660, %v1712
      %v1718 = vadd.f32 %v1661, %v1712
      %v1719 = vadd.f32 %v1662, %v1712
      %v1720 = vadd.f32 %v1663, %v1712
      %v1721 = vadd.f32 %v1664, %v1712
      %v1722 = vadd.f32 %v1665, %v1712
      %v1723 = vadd.f32 %v1666, %v1712
      %v1724 = vadd.f32 %v1667, %v1712
      %v1725 = vadd.f32 %v1668, %v1712
      %v1726 = vadd.f32 %v1669, %v1712
      %v1727 = vadd.f32 %v1670, %v1712
      %v1728 = vadd.f32 %v1671, %v1712
      %v1729 = vadd.f32 %v1672, %v1712
      %v1730 = vadd.f32 %v1714, %v1692
      %v1731 = vadd.f32 %v1715, %v1693
      %v1732 = vadd.f32 %v1716, %v1694
      %v1733 = vadd.f32 %v1717, %v1695
      %v1734 = vadd.f32 %v1718, %v1696
      %v1735 = vadd.f32 %v1719, %v1697
      %v1736 = vadd.f32 %v1720, %v1698
      %v1737 = vadd.f32 %v1721, %v1699
      %v1738 = vadd.f32 %v1722, %v1700
      %v1739 = vadd.f32 %v1723, %v1701
      %v1740 = vadd.f32 %v1724, %v1702
      %v1741 = vadd.f32 %v1725, %v1703
      %v1742 = vadd.f32 %v1726, %v1704
      %v1743 = vadd.f32 %v1727, %v1705
      %v1744 = vadd.f32 %v1728, %v1706
      %v1745 = vadd.f32 %v1729, %v1707
      %v1746 = vmax.f32 %v1730, 0.0
      %v1747 = vmax.f32 %v1731, 0.0
      %v1748 = vmax.f32 %v1732, 0.0
      %v1749 = vmax.f32 %v1733, 0.0
      %v1750 = vmax.f32 %v1734, 0.0
      %v1751 = vmax.f32 %v1735, 0.0
      %v1752 = vmax.f32 %v1736, 0.0
      %v1753 = vmax.f32 %v1737, 0.0
      %v1754 = vmax.f32 %v1738, 0.0
      %v1755 = vmax.f32 %v1739, 0.0
      %v1756 = vmax.f32 %v1740, 0.0
      %v1757 = vmax.f32 %v1741, 0.0
      %v1758 = vmax.f32 %v1742, 0.0
      %v1759 = vmax.f32 %v1743, 0.0
      %v1760 = vmax.f32 %v1744, 0.0
      %v1761 = vmax.f32 %v1745, 0.0
      %v1762 = vpack.c.bf16 %v1747, %v1746
      %v1763 = vpack.c.bf16 %v1749, %v1748
      %v1764 = vpack.c.bf16 %v1751, %v1750
      %v1765 = vpack.c.bf16 %v1753, %v1752
      %v1766 = vpack.c.bf16 %v1755, %v1754
      %v1767 = vpack.c.bf16 %v1757, %v1756
      %v1768 = vpack.c.bf16 %v1759, %v1758
      %v1769 = vpack.c.bf16 %v1761, %v1760
      %v1778 = vunpack.c.l.b16 %v1762
      %v1779 = vunpack.c.h.b16 %v1762
      %v1780 = vunpack.c.l.b16 %v1763
      %v1781 = vunpack.c.h.b16 %v1763
      %v1782 = vunpack.c.l.b16 %v1764
      %v1783 = vunpack.c.h.b16 %v1764
      %v1784 = vunpack.c.l.b16 %v1765
      %v1785 = vunpack.c.h.b16 %v1765
      %v1786 = vunpack.c.l.b16 %v1766
      %v1787 = vunpack.c.h.b16 %v1766
      %v1788 = vunpack.c.l.b16 %v1767
      %v1789 = vunpack.c.h.b16 %v1767
      %v1790 = vunpack.c.l.b16 %v1768
      %v1791 = vunpack.c.h.b16 %v1768
      %v1792 = vunpack.c.l.b16 %v1769
      %v1793 = vunpack.c.h.b16 %v1769
      %v1794 = vpack.c.b16 %v1778, %v1778
      %v1795 = vpack.c.b16 %v1779, %v1779
      %v1796 = vpack.c.b16 %v1780, %v1780
      %v1797 = vpack.c.b16 %v1781, %v1781
      %v1798 = vpack.c.b16 %v1782, %v1782
      %v1799 = vpack.c.b16 %v1783, %v1783
      %v1800 = vpack.c.b16 %v1784, %v1784
      %v1801 = vpack.c.b16 %v1785, %v1785
      %v1802 = vpack.c.b16 %v1786, %v1786
      %v1803 = vpack.c.b16 %v1787, %v1787
      %v1804 = vpack.c.b16 %v1788, %v1788
      %v1805 = vpack.c.b16 %v1789, %v1789
      %v1806 = vpack.c.b16 %v1790, %v1790
      %v1807 = vpack.c.b16 %v1791, %v1791
      %v1808 = vpack.c.b16 %v1792, %v1792
      %v1809 = vpack.c.b16 %v1793, %v1793
      %s1826 = smul.addr %s1673, 4
      %s1827 = scalar_lea.vmem %s224, %s1826
      %vm1828 = vcmask 257024
      %1829 = vst.msk [vmem:[%s1827] sm:$0xf] %vm1828, %v1794
      %1830 = vst.msk [vmem:[%s1827 + $0x4] sm:$0xf] %vm1828, %v1795
      %1831 = vst.msk [vmem:[%s1827 + $0x8] sm:$0xf] %vm1828, %v1796
      %1832 = vst.msk [vmem:[%s1827 + $0xc] sm:$0xf] %vm1828, %v1797
      %1833 = vst.msk [vmem:[%s1827 + $0x10] sm:$0xf] %vm1828, %v1798
      %1834 = vst.msk [vmem:[%s1827 + $0x14] sm:$0xf] %vm1828, %v1799
      %1835 = vst.msk [vmem:[%s1827 + $0x18] sm:$0xf] %vm1828, %v1800
      %1836 = vst.msk [vmem:[%s1827 + $0x1c] sm:$0xf] %vm1828, %v1801
      %1837 = vst.msk [vmem:[%s1827 + $0x20] sm:$0xf] %vm1828, %v1802
      %1838 = vst.msk [vmem:[%s1827 + $0x24] sm:$0xf] %vm1828, %v1803
      %1839 = vst.msk [vmem:[%s1827 + $0x28] sm:$0xf] %vm1828, %v1804
      %1840 = vst.msk [vmem:[%s1827 + $0x2c] sm:$0xf] %vm1828, %v1805
      %1841 = vst.msk [vmem:[%s1827 + $0x30] sm:$0xf] %vm1828, %v1806
      %1842 = vst.msk [vmem:[%s1827 + $0x34] sm:$0xf] %vm1828, %v1807
      %1843 = vst.msk [vmem:[%s1827 + $0x38] sm:$0xf] %vm1828, %v1808
      %1844 = vst.msk [vmem:[%s1827 + $0x3c] sm:$0xf] %vm1828, %v1809
      %s1845 = scalar_lea.vmem [#allocation2], 64
      %v1846 = vld [vmem:[%s1845] sm:$0xff]
      %v1847 = vld [vmem:[%s1845 + $0x8] sm:$0xff]
      %v1848 = vld [vmem:[%s1845 + $0x10] sm:$0xff]
      %v1849 = vld [vmem:[%s1845 + $0x18] sm:$0xff]
      %v1850 = vld [vmem:[%s1845 + $0x20] sm:$0xff]
      %v1851 = vld [vmem:[%s1845 + $0x28] sm:$0xff]
      %v1852 = vld [vmem:[%s1845 + $0x30] sm:$0xff]
      %v1853 = vld [vmem:[%s1845 + $0x38] sm:$0xff]
      %v1854 = vld [vmem:[%s3] sm:$0xf]
      %v1855 = vld [vmem:[%s3 + $0x4] sm:$0xf]
      %v1856 = vld [vmem:[%s3 + $0x8] sm:$0xf]
      %v1857 = vld [vmem:[%s3 + $0xc] sm:$0xf]
      %v1858 = vld [vmem:[%s3 + $0x10] sm:$0xf]
      %v1859 = vld [vmem:[%s3 + $0x14] sm:$0xf]
      %v1860 = vld [vmem:[%s3 + $0x18] sm:$0xf]
      %v1861 = vld [vmem:[%s3 + $0x1c] sm:$0xf]
      %v1862 = vld [vmem:[%s3 + $0x20] sm:$0xf]
      %v1863 = vld [vmem:[%s3 + $0x24] sm:$0xf]
      %v1864 = vld [vmem:[%s3 + $0x28] sm:$0xf]
      %v1865 = vld [vmem:[%s3 + $0x2c] sm:$0xf]
      %s1866 = sadd.s32 8, 1
      %s1867 = smul.addr %s1866, 8
      %s1868 = scalar_lea.vmem [#allocation2], %s1867
      %v1869 = vld [vmem:[%s1868] sm:$0xff]
      %v1870 = vld [vmem:[%s1868 + $0x8] sm:$0xff]
      %v1871 = vld [vmem:[%s1868 + $0x10] sm:$0xff]
      %v1872 = vld [vmem:[%s1868 + $0x18] sm:$0xff]
      %v1873 = vld [vmem:[%s1868 + $0x20] sm:$0xff]
      %v1874 = vld [vmem:[%s1868 + $0x28] sm:$0xff]
      %v1875 = vld [vmem:[%s1868 + $0x30] sm:$0xff]
      %v1876 = vld [vmem:[%s1868 + $0x38] sm:$0xff]
      %v1877 = vld [vmem:[%s1149] sm:$0xf]
      %v1878 = vld [vmem:[%s1149 + $0x4] sm:$0xf]
      %v1879 = vld [vmem:[%s1149 + $0x8] sm:$0xf]
      %v1880 = vld [vmem:[%s1149 + $0xc] sm:$0xf]
      %v1881 = vld [vmem:[%s1149 + $0x10] sm:$0xf]
      %v1882 = vld [vmem:[%s1149 + $0x14] sm:$0xf]
      %v1883 = vld [vmem:[%s1149 + $0x18] sm:$0xf]
      %v1884 = vld [vmem:[%s1149 + $0x1c] sm:$0xf]
      %v1885 = vld [vmem:[%s1149 + $0x20] sm:$0xf]
      %v1886 = vld [vmem:[%s1149 + $0x24] sm:$0xf]
      %v1887 = vld [vmem:[%s1149 + $0x28] sm:$0xf]
      %v1888 = vld [vmem:[%s1149 + $0x2c] sm:$0xf]
      %v1901 = vunpack.c.l.b16 %v1877
      %v1902 = vunpack.c.l.b16 %v1878
      %v1903 = vunpack.c.l.b16 %v1879
      %v1904 = vunpack.c.l.b16 %v1880
      %v1905 = vunpack.c.l.b16 %v1881
      %v1906 = vunpack.c.l.b16 %v1882
      %v1907 = vunpack.c.l.b16 %v1883
      %v1908 = vunpack.c.l.b16 %v1884
      %v1909 = vunpack.c.l.b16 %v1885
      %v1910 = vunpack.c.l.b16 %v1886
      %v1911 = vunpack.c.l.b16 %v1887
      %v1912 = vunpack.c.l.b16 %v1888
      %v1913 = vpack.c.b16 %v1902, %v1901
      %v1914 = vpack.c.b16 %v1904, %v1903
      %v1915 = vpack.c.b16 %v1906, %v1905
      %v1916 = vpack.c.b16 %v1908, %v1907
      %v1917 = vpack.c.b16 %v1910, %v1909
      %v1918 = vpack.c.b16 %v1912, %v1911
      %v1926 = vsel %vm619, %v1869, 0
      %v1929 = vsel %vm619, %v1870, 0
      %v1932 = vsel %vm619, %v1871, 0
      %v1935 = vsel %vm619, %v1872, 0
      %v1938 = vsel %vm619, %v1873, 0
      %v1941 = vsel %vm619, %v1874, 0
      %v1944 = vsel %vm619, %v1875, 0
      %v1947 = vsel %vm619, %v1876, 0
      %1949 = vmatprep.subr.bf16.mxu0 0
      %1950 = vmatpush1.bf16.msra.mxu0 %v1913
      %1951 = vmatprep.subr.bf16.mxu0 0
      %1952 = vmatpush1.bf16.msra.mxu0 %v1914
      %1953 = vmatprep.subr.bf16.mxu0 0
      %1954 = vmatpush1.bf16.msra.mxu0 %v1915
      %1955 = vmatprep.subr.bf16.mxu0 0
      %1956 = vmatpush1.bf16.msra.mxu0 %v1916
      %1957 = vmatprep.subr.bf16.mxu0 0
      %1958 = vmatpush1.bf16.msra.mxu0 %v1917
      %1959 = vmatprep.subr.bf16.mxu0 0
      %1960 = vmatpush1.bf16.msra.mxu0 %v1918
      %1961 = vmatprep.subr.bf16.mxu0 0
      %1962 = vmatpush1.bf16.msra.mxu0 0
      %1963 = vmatprep.subr.bf16.mxu0 0
      %1964 = vmatpush1.bf16.msra.mxu0 0
      %1965 = vmatprep.subr.bf16.mxu0 0
      %1966 = vmatpush1.bf16.msra.mxu0 0
      %1967 = vmatprep.subr.bf16.mxu0 0
      %1968 = vmatpush1.bf16.msra.mxu0 0
      %1969 = vmatprep.subr.bf16.mxu0 0
      %1970 = vmatpush1.bf16.msra.mxu0 0
      %1971 = vmatprep.subr.bf16.mxu0 0
      %1972 = vmatpush1.bf16.msra.mxu0 0
      %1973 = vmatprep.subr.bf16.mxu0 0
      %1974 = vmatpush1.bf16.msra.mxu0 0
      %1975 = vmatprep.subr.bf16.mxu0 0
      %1976 = vmatpush1.bf16.msra.mxu0 0
      %1977 = vmatprep.subr.bf16.mxu0 0
      %1978 = vmatpush1.bf16.msra.mxu0 0
      %1979 = vmatprep.subr.bf16.mxu0 0
      %1980 = vmatpush1.bf16.msra.mxu0 0
      %1981 = vmatprep.mubr.bf16.mxu0 0
      %1982 = vmatmul.mubr.bf16.gmra.mrb[0].mxu0 %v1926
      %v1983 = vpop.f32.mrb[0].mxu0
      %v1984 = vadd.f32 0.0, %v1983
      %v1985 = vpop.f32.mrb[0].mxu0
      %v1986 = vpop.f32.mrb[0].mxu0
      %v1987 = vadd.f32 0.0, %v1986
      %v1988 = vpop.f32.mrb[0].mxu0
      %1989 = vmatprep.mubr.bf16.mxu0 0
      %1990 = vmatmul.mubr.bf16.gmra.mrb[0].mxu0 %v1929
      %v1991 = vpop.f32.mrb[0].mxu0
      %v1992 = vadd.f32 0.0, %v1991
      %v1993 = vpop.f32.mrb[0].mxu0
      %v1994 = vpop.f32.mrb[0].mxu0
      %v1995 = vadd.f32 0.0, %v1994
      %v1996 = vpop.f32.mrb[0].mxu0
      %1997 = vmatprep.mubr.bf16.mxu0 0
      %1998 = vmatmul.mubr.bf16.gmra.mrb[0].mxu0 %v1932
      %v1999 = vpop.f32.mrb[0].mxu0
      %v2000 = vadd.f32 0.0, %v1999
      %v2001 = vpop.f32.mrb[0].mxu0
      %v2002 = vpop.f32.mrb[0].mxu0
      %v2003 = vadd.f32 0.0, %v2002
      %v2004 = vpop.f32.mrb[0].mxu0
      %2005 = vmatprep.mubr.bf16.mxu0 0
      %2006 = vmatmul.mubr.bf16.gmra.mrb[0].mxu0 %v1935
      %v2007 = vpop.f32.mrb[0].mxu0
      %v2008 = vadd.f32 0.0, %v2007
      %v2009 = vpop.f32.mrb[0].mxu0
      %v2010 = vpop.f32.mrb[0].mxu0
      %v2011 = vadd.f32 0.0, %v2010
      %v2012 = vpop.f32.mrb[0].mxu0
      %2013 = vmatprep.mubr.bf16.mxu0 0
      %2014 = vmatmul.mubr.bf16.gmra.mrb[0].mxu0 %v1938
      %v2015 = vpop.f32.mrb[0].mxu0
      %v2016 = vadd.f32 0.0, %v2015
      %v2017 = vpop.f32.mrb[0].mxu0
      %v2018 = vpop.f32.mrb[0].mxu0
      %v2019 = vadd.f32 0.0, %v2018
      %v2020 = vpop.f32.mrb[0].mxu0
      %2021 = vmatprep.mubr.bf16.mxu0 0
      %2022 = vmatmul.mubr.bf16.gmra.mrb[0].mxu0 %v1941
      %v2023 = vpop.f32.mrb[0].mxu0
      %v2024 = vadd.f32 0.0, %v2023
      %v2025 = vpop.f32.mrb[0].mxu0
      %v2026 = vpop.f32.mrb[0].mxu0
      %v2027 = vadd.f32 0.0, %v2026
      %v2028 = vpop.f32.mrb[0].mxu0
      %2029 = vmatprep.mubr.bf16.mxu0 0
      %2030 = vmatmul.mubr.bf16.gmra.mrb[0].mxu0 %v1944
      %v2031 = vpop.f32.mrb[0].mxu0
      %v2032 = vadd.f32 0.0, %v2031
      %v2033 = vpop.f32.mrb[0].mxu0
      %v2034 = vpop.f32.mrb[0].mxu0
      %v2035 = vadd.f32 0.0, %v2034
      %v2036 = vpop.f32.mrb[0].mxu0
      %2037 = vmatprep.mubr.bf16.mxu0 0
      %2038 = vmatmul.mubr.bf16.gmra.mrb[0].mxu0 %v1947
      %v2039 = vpop.f32.mrb[0].mxu0
      %v2040 = vadd.f32 0.0, %v2039
      %v2041 = vpop.f32.mrb[0].mxu0
      %v2042 = vpop.f32.mrb[0].mxu0
      %v2043 = vadd.f32 0.0, %v2042
      %v2044 = vpop.f32.mrb[0].mxu0
      %2045 = vdwg.mxu0
      %v2058 = vunpack.c.l.b16 %v1854
      %v2059 = vunpack.c.l.b16 %v1855
      %v2060 = vunpack.c.l.b16 %v1856
      %v2061 = vunpack.c.l.b16 %v1857
      %v2062 = vunpack.c.l.b16 %v1858
      %v2063 = vunpack.c.l.b16 %v1859
      %v2064 = vunpack.c.l.b16 %v1860
      %v2065 = vunpack.c.l.b16 %v1861
      %v2066 = vunpack.c.l.b16 %v1862
      %v2067 = vunpack.c.l.b16 %v1863
      %v2068 = vunpack.c.l.b16 %v1864
      %v2069 = vunpack.c.l.b16 %v1865
      %v2070 = vpack.c.b16 %v2059, %v2058
      %v2071 = vpack.c.b16 %v2061, %v2060
      %v2072 = vpack.c.b16 %v2063, %v2062
      %v2073 = vpack.c.b16 %v2065, %v2064
      %v2074 = vpack.c.b16 %v2067, %v2066
      %v2075 = vpack.c.b16 %v2069, %v2068
      %v2083 = vsel %vm619, %v1846, 0
      %v2086 = vsel %vm619, %v1847, 0
      %v2089 = vsel %vm619, %v1848, 0
      %v2092 = vsel %vm619, %v1849, 0
      %v2095 = vsel %vm619, %v1850, 0
      %v2098 = vsel %vm619, %v1851, 0
      %v2101 = vsel %vm619, %v1852, 0
      %v2104 = vsel %vm619, %v1853, 0
      %2106 = vmatprep.subr.bf16.mxu0 0
      %2107 = vmatpush1.bf16.msra.mxu0 %v2070
      %2108 = vmatprep.subr.bf16.mxu0 0
      %2109 = vmatpush1.bf16.msra.mxu0 %v2071
      %2110 = vmatprep.subr.bf16.mxu0 0
      %2111 = vmatpush1.bf16.msra.mxu0 %v2072
      %2112 = vmatprep.subr.bf16.mxu0 0
      %2113 = vmatpush1.bf16.msra.mxu0 %v2073
      %2114 = vmatprep.subr.bf16.mxu0 0
      %2115 = vmatpush1.bf16.msra.mxu0 %v2074
      %2116 = vmatprep.subr.bf16.mxu0 0
      %2117 = vmatpush1.bf16.msra.mxu0 %v2075
      %2118 = vmatprep.subr.bf16.mxu0 0
      %2119 = vmatpush1.bf16.msra.mxu0 0
      %2120 = vmatprep.subr.bf16.mxu0 0
      %2121 = vmatpush1.bf16.msra.mxu0 0
      %2122 = vmatprep.subr.bf16.mxu0 0
      %2123 = vmatpush1.bf16.msra.mxu0 0
      %2124 = vmatprep.subr.bf16.mxu0 0
      %2125 = vmatpush1.bf16.msra.mxu0 0
      %2126 = vmatprep.subr.bf16.mxu0 0
      %2127 = vmatpush1.bf16.msra.mxu0 0
      %2128 = vmatprep.subr.bf16.mxu0 0
      %2129 = vmatpush1.bf16.msra.mxu0 0
      %2130 = vmatprep.subr.bf16.mxu0 0
      %2131 = vmatpush1.bf16.msra.mxu0 0
      %2132 = vmatprep.subr.bf16.mxu0 0
      %2133 = vmatpush1.bf16.msra.mxu0 0
      %2134 = vmatprep.subr.bf16.mxu0 0
      %2135 = vmatpush1.bf16.msra.mxu0 0
      %2136 = vmatprep.subr.bf16.mxu0 0
      %2137 = vmatpush1.bf16.msra.mxu0 0
      %2138 = vmatprep.mubr.bf16.mxu0 0
      %2139 = vmatmul.mubr.bf16.gmra.mrb[0].mxu0 %v2083
      %v2140 = vpop.f32.mrb[0].mxu0
      %v2141 = vadd.f32 %v1984, %v2140
      %v2142 = vpop.f32.mrb[0].mxu0
      %v2143 = vpop.f32.mrb[0].mxu0
      %v2144 = vadd.f32 %v1987, %v2143
      %v2145 = vpop.f32.mrb[0].mxu0
      %2146 = vmatprep.mubr.bf16.mxu0 0
      %2147 = vmatmul.mubr.bf16.gmra.mrb[0].mxu0 %v2086
      %v2148 = vpop.f32.mrb[0].mxu0
      %v2149 = vadd.f32 %v1992, %v2148
      %v2150 = vpop.f32.mrb[0].mxu0
      %v2151 = vpop.f32.mrb[0].mxu0
      %v2152 = vadd.f32 %v1995, %v2151
      %v2153 = vpop.f32.mrb[0].mxu0
      %2154 = vmatprep.mubr.bf16.mxu0 0
      %2155 = vmatmul.mubr.bf16.gmra.mrb[0].mxu0 %v2089
      %v2156 = vpop.f32.mrb[0].mxu0
      %v2157 = vadd.f32 %v2000, %v2156
      %v2158 = vpop.f32.mrb[0].mxu0
      %v2159 = vpop.f32.mrb[0].mxu0
      %v2160 = vadd.f32 %v2003, %v2159
      %v2161 = vpop.f32.mrb[0].mxu0
      %2162 = vmatprep.mubr.bf16.mxu0 0
      %2163 = vmatmul.mubr.bf16.gmra.mrb[0].mxu0 %v2092
      %v2164 = vpop.f32.mrb[0].mxu0
      %v2165 = vadd.f32 %v2008, %v2164
      %v2166 = vpop.f32.mrb[0].mxu0
      %v2167 = vpop.f32.mrb[0].mxu0
      %v2168 = vadd.f32 %v2011, %v2167
      %v2169 = vpop.f32.mrb[0].mxu0
      %2170 = vmatprep.mubr.bf16.mxu0 0
      %2171 = vmatmul.mubr.bf16.gmra.mrb[0].mxu0 %v2095
      %v2172 = vpop.f32.mrb[0].mxu0
      %v2173 = vadd.f32 %v2016, %v2172
      %v2174 = vpop.f32.mrb[0].mxu0
      %v2175 = vpop.f32.mrb[0].mxu0
      %v2176 = vadd.f32 %v2019, %v2175
      %v2177 = vpop.f32.mrb[0].mxu0
      %2178 = vmatprep.mubr.bf16.mxu0 0
      %2179 = vmatmul.mubr.bf16.gmra.mrb[0].mxu0 %v2098
      %v2180 = vpop.f32.mrb[0].mxu0
      %v2181 = vadd.f32 %v2024, %v2180
      %v2182 = vpop.f32.mrb[0].mxu0
      %v2183 = vpop.f32.mrb[0].mxu0
      %v2184 = vadd.f32 %v2027, %v2183
      %v2185 = vpop.f32.mrb[0].mxu0
      %2186 = vmatprep.mubr.bf16.mxu0 0
      %2187 = vmatmul.mubr.bf16.gmra.mrb[0].mxu0 %v2101
      %v2188 = vpop.f32.mrb[0].mxu0
      %v2189 = vadd.f32 %v2032, %v2188
      %v2190 = vpop.f32.mrb[0].mxu0
      %v2191 = vpop.f32.mrb[0].mxu0
      %v2192 = vadd.f32 %v2035, %v2191
      %v2193 = vpop.f32.mrb[0].mxu0
      %2194 = vmatprep.mubr.bf16.mxu0 0
      %2195 = vmatmul.mubr.bf16.gmra.mrb[0].mxu0 %v2104
      %v2196 = vpop.f32.mrb[0].mxu0
      %v2197 = vadd.f32 %v2040, %v2196
      %v2198 = vpop.f32.mrb[0].mxu0
      %v2199 = vpop.f32.mrb[0].mxu0
      %v2200 = vadd.f32 %v2043, %v2199
      %v2201 = vpop.f32.mrb[0].mxu0
      %2202 = vdwg.mxu0
      %s2203 = sadd.s32 8, 2
      %s2204 = smul.addr %s2203, 8
      %s2205 = scalar_lea.vmem [#allocation2], %s2204
      %v2206 = vld [vmem:[%s2205] sm:$0xff]
      %v2207 = vld [vmem:[%s2205 + $0x8] sm:$0xff]
      %v2208 = vld [vmem:[%s2205 + $0x10] sm:$0xff]
      %v2209 = vld [vmem:[%s2205 + $0x18] sm:$0xff]
      %v2210 = vld [vmem:[%s2205 + $0x20] sm:$0xff]
      %v2211 = vld [vmem:[%s2205 + $0x28] sm:$0xff]
      %v2212 = vld [vmem:[%s2205 + $0x30] sm:$0xff]
      %v2213 = vld [vmem:[%s2205 + $0x38] sm:$0xff]
      %v2214 = vld [vmem:[%s1487] sm:$0xf]
      %v2215 = vld [vmem:[%s1487 + $0x4] sm:$0xf]
      %v2216 = vld [vmem:[%s1487 + $0x8] sm:$0xf]
      %v2217 = vld [vmem:[%s1487 + $0xc] sm:$0xf]
      %v2218 = vld [vmem:[%s1487 + $0x10] sm:$0xf]
      %v2219 = vld [vmem:[%s1487 + $0x14] sm:$0xf]
      %v2220 = vld [vmem:[%s1487 + $0x18] sm:$0xf]
      %v2221 = vld [vmem:[%s1487 + $0x1c] sm:$0xf]
      %v2222 = vld [vmem:[%s1487 + $0x20] sm:$0xf]
      %v2223 = vld [vmem:[%s1487 + $0x24] sm:$0xf]
      %v2224 = vld [vmem:[%s1487 + $0x28] sm:$0xf]
      %v2225 = vld [vmem:[%s1487 + $0x2c] sm:$0xf]
      %v2238 = vunpack.c.l.b16 %v2214
      %v2239 = vunpack.c.l.b16 %v2215
      %v2240 = vunpack.c.l.b16 %v2216
      %v2241 = vunpack.c.l.b16 %v2217
      %v2242 = vunpack.c.l.b16 %v2218
      %v2243 = vunpack.c.l.b16 %v2219
      %v2244 = vunpack.c.l.b16 %v2220
      %v2245 = vunpack.c.l.b16 %v2221
      %v2246 = vunpack.c.l.b16 %v2222
      %v2247 = vunpack.c.l.b16 %v2223
      %v2248 = vunpack.c.l.b16 %v2224
      %v2249 = vunpack.c.l.b16 %v2225
      %v2250 = vpack.c.b16 %v2239, %v2238
      %v2251 = vpack.c.b16 %v2241, %v2240
      %v2252 = vpack.c.b16 %v2243, %v2242
      %v2253 = vpack.c.b16 %v2245, %v2244
      %v2254 = vpack.c.b16 %v2247, %v2246
      %v2255 = vpack.c.b16 %v2249, %v2248
      %v2263 = vsel %vm619, %v2206, 0
      %v2266 = vsel %vm619, %v2207, 0
      %v2269 = vsel %vm619, %v2208, 0
      %v2272 = vsel %vm619, %v2209, 0
      %v2275 = vsel %vm619, %v2210, 0
      %v2278 = vsel %vm619, %v2211, 0
      %v2281 = vsel %vm619, %v2212, 0
      %v2284 = vsel %vm619, %v2213, 0
      %2286 = vmatprep.subr.bf16.mxu0 0
      %2287 = vmatpush1.bf16.msra.mxu0 %v2250
      %2288 = vmatprep.subr.bf16.mxu0 0
      %2289 = vmatpush1.bf16.msra.mxu0 %v2251
      %2290 = vmatprep.subr.bf16.mxu0 0
      %2291 = vmatpush1.bf16.msra.mxu0 %v2252
      %2292 = vmatprep.subr.bf16.mxu0 0
      %2293 = vmatpush1.bf16.msra.mxu0 %v2253
      %2294 = vmatprep.subr.bf16.mxu0 0
      %2295 = vmatpush1.bf16.msra.mxu0 %v2254
      %2296 = vmatprep.subr.bf16.mxu0 0
      %2297 = vmatpush1.bf16.msra.mxu0 %v2255
      %2298 = vmatprep.subr.bf16.mxu0 0
      %2299 = vmatpush1.bf16.msra.mxu0 0
      %2300 = vmatprep.subr.bf16.mxu0 0
      %2301 = vmatpush1.bf16.msra.mxu0 0
      %2302 = vmatprep.subr.bf16.mxu0 0
      %2303 = vmatpush1.bf16.msra.mxu0 0
      %2304 = vmatprep.subr.bf16.mxu0 0
      %2305 = vmatpush1.bf16.msra.mxu0 0
      %2306 = vmatprep.subr.bf16.mxu0 0
      %2307 = vmatpush1.bf16.msra.mxu0 0
      %2308 = vmatprep.subr.bf16.mxu0 0
      %2309 = vmatpush1.bf16.msra.mxu0 0
      %2310 = vmatprep.subr.bf16.mxu0 0
      %2311 = vmatpush1.bf16.msra.mxu0 0
      %2312 = vmatprep.subr.bf16.mxu0 0
      %2313 = vmatpush1.bf16.msra.mxu0 0
      %2314 = vmatprep.subr.bf16.mxu0 0
      %2315 = vmatpush1.bf16.msra.mxu0 0
      %2316 = vmatprep.subr.bf16.mxu0 0
      %2317 = vmatpush1.bf16.msra.mxu0 0
      %2318 = vmatprep.mubr.bf16.mxu0 0
      %2319 = vmatmul.mubr.bf16.gmra.mrb[0].mxu0 %v2263
      %v2320 = vpop.f32.mrb[0].mxu0
      %v2321 = vadd.f32 0.0, %v2320
      %v2322 = vpop.f32.mrb[0].mxu0
      %v2323 = vpop.f32.mrb[0].mxu0
      %v2324 = vadd.f32 0.0, %v2323
      %v2325 = vpop.f32.mrb[0].mxu0
      %2326 = vmatprep.mubr.bf16.mxu0 0
      %2327 = vmatmul.mubr.bf16.gmra.mrb[0].mxu0 %v2266
      %v2328 = vpop.f32.mrb[0].mxu0
      %v2329 = vadd.f32 0.0, %v2328
      %v2330 = vpop.f32.mrb[0].mxu0
      %v2331 = vpop.f32.mrb[0].mxu0
      %v2332 = vadd.f32 0.0, %v2331
      %v2333 = vpop.f32.mrb[0].mxu0
      %2334 = vmatprep.mubr.bf16.mxu0 0
      %2335 = vmatmul.mubr.bf16.gmra.mrb[0].mxu0 %v2269
      %v2336 = vpop.f32.mrb[0].mxu0
      %v2337 = vadd.f32 0.0, %v2336
      %v2338 = vpop.f32.mrb[0].mxu0
      %v2339 = vpop.f32.mrb[0].mxu0
      %v2340 = vadd.f32 0.0, %v2339
      %v2341 = vpop.f32.mrb[0].mxu0
      %2342 = vmatprep.mubr.bf16.mxu0 0
      %2343 = vmatmul.mubr.bf16.gmra.mrb[0].mxu0 %v2272
      %v2344 = vpop.f32.mrb[0].mxu0
      %v2345 = vadd.f32 0.0, %v2344
      %v2346 = vpop.f32.mrb[0].mxu0
      %v2347 = vpop.f32.mrb[0].mxu0
      %v2348 = vadd.f32 0.0, %v2347
      %v2349 = vpop.f32.mrb[0].mxu0
      %2350 = vmatprep.mubr.bf16.mxu0 0
      %2351 = vmatmul.mubr.bf16.gmra.mrb[0].mxu0 %v2275
      %v2352 = vpop.f32.mrb[0].mxu0
      %v2353 = vadd.f32 0.0, %v2352
      %v2354 = vpop.f32.mrb[0].mxu0
      %v2355 = vpop.f32.mrb[0].mxu0
      %v2356 = vadd.f32 0.0, %v2355
      %v2357 = vpop.f32.mrb[0].mxu0
      %2358 = vmatprep.mubr.bf16.mxu0 0
      %2359 = vmatmul.mubr.bf16.gmra.mrb[0].mxu0 %v2278
      %v2360 = vpop.f32.mrb[0].mxu0
      %v2361 = vadd.f32 0.0, %v2360
      %v2362 = vpop.f32.mrb[0].mxu0
      %v2363 = vpop.f32.mrb[0].mxu0
      %v2364 = vadd.f32 0.0, %v2363
      %v2365 = vpop.f32.mrb[0].mxu0
      %2366 = vmatprep.mubr.bf16.mxu0 0
      %2367 = vmatmul.mubr.bf16.gmra.mrb[0].mxu0 %v2281
      %v2368 = vpop.f32.mrb[0].mxu0
      %v2369 = vadd.f32 0.0, %v2368
      %v2370 = vpop.f32.mrb[0].mxu0
      %v2371 = vpop.f32.mrb[0].mxu0
      %v2372 = vadd.f32 0.0, %v2371
      %v2373 = vpop.f32.mrb[0].mxu0
      %2374 = vmatprep.mubr.bf16.mxu0 0
      %2375 = vmatmul.mubr.bf16.gmra.mrb[0].mxu0 %v2284
      %v2376 = vpop.f32.mrb[0].mxu0
      %v2377 = vadd.f32 0.0, %v2376
      %v2378 = vpop.f32.mrb[0].mxu0
      %v2379 = vpop.f32.mrb[0].mxu0
      %v2380 = vadd.f32 0.0, %v2379
      %v2381 = vpop.f32.mrb[0].mxu0
      %2382 = vdwg.mxu0
      %v2383 = vadd.f32 %v2141, %v2321
      %v2384 = vadd.f32 %v2144, %v2324
      %v2385 = vadd.f32 %v2149, %v2329
      %v2386 = vadd.f32 %v2152, %v2332
      %v2387 = vadd.f32 %v2157, %v2337
      %v2388 = vadd.f32 %v2160, %v2340
      %v2389 = vadd.f32 %v2165, %v2345
      %v2390 = vadd.f32 %v2168, %v2348
      %v2391 = vadd.f32 %v2173, %v2353
      %v2392 = vadd.f32 %v2176, %v2356
      %v2393 = vadd.f32 %v2181, %v2361
      %v2394 = vadd.f32 %v2184, %v2364
      %v2395 = vadd.f32 %v2189, %v2369
      %v2396 = vadd.f32 %v2192, %v2372
      %v2397 = vadd.f32 %v2197, %v2377
      %v2398 = vadd.f32 %v2200, %v2380
      %s2399 = smul.u32 8, 2
      %s2400 = smul.addr %s2399, 4
      %s2401 = scalar_lea.vmem %s219, %s2400
      %v2402 = vld [vmem:[%s2401] sm:$0xf]
      %v2403 = vld [vmem:[%s2401 + $0x4] sm:$0xf]
      %v2404 = vld [vmem:[%s2401 + $0x8] sm:$0xf]
      %v2405 = vld [vmem:[%s2401 + $0xc] sm:$0xf]
      %v2406 = vld [vmem:[%s2401 + $0x10] sm:$0xf]
      %v2407 = vld [vmem:[%s2401 + $0x14] sm:$0xf]
      %v2408 = vld [vmem:[%s2401 + $0x18] sm:$0xf]
      %v2409 = vld [vmem:[%s2401 + $0x1c] sm:$0xf]
      %v2410 = vld [vmem:[%s2401 + $0x20] sm:$0xf]
      %v2411 = vld [vmem:[%s2401 + $0x24] sm:$0xf]
      %v2412 = vld [vmem:[%s2401 + $0x28] sm:$0xf]
      %v2413 = vld [vmem:[%s2401 + $0x2c] sm:$0xf]
      %v2414 = vld [vmem:[%s2401 + $0x30] sm:$0xf]
      %v2415 = vld [vmem:[%s2401 + $0x34] sm:$0xf]
      %v2416 = vld [vmem:[%s2401 + $0x38] sm:$0xf]
      %v2417 = vld [vmem:[%s2401 + $0x3c] sm:$0xf]
      %v2418 = vunpack.c.l.bf16 %v2402
      %v2419 = vunpack.c.l.bf16 %v2403
      %v2420 = vunpack.c.l.bf16 %v2404
      %v2421 = vunpack.c.l.bf16 %v2405
      %v2422 = vunpack.c.l.bf16 %v2406
      %v2423 = vunpack.c.l.bf16 %v2407
      %v2424 = vunpack.c.l.bf16 %v2408
      %v2425 = vunpack.c.l.bf16 %v2409
      %v2426 = vunpack.c.l.bf16 %v2410
      %v2427 = vunpack.c.l.bf16 %v2411
      %v2428 = vunpack.c.l.bf16 %v2412
      %v2429 = vunpack.c.l.bf16 %v2413
      %v2430 = vunpack.c.l.bf16 %v2414
      %v2431 = vunpack.c.l.bf16 %v2415
      %v2432 = vunpack.c.l.bf16 %v2416
      %v2433 = vunpack.c.l.bf16 %v2417
      %v2434 = vadd.f32 %v2383, %v1712
      %v2435 = vadd.f32 %v2384, %v1712
      %v2436 = vadd.f32 %v2385, %v1712
      %v2437 = vadd.f32 %v2386, %v1712
      %v2438 = vadd.f32 %v2387, %v1712
      %v2439 = vadd.f32 %v2388, %v1712
      %v2440 = vadd.f32 %v2389, %v1712
      %v2441 = vadd.f32 %v2390, %v1712
      %v2442 = vadd.f32 %v2391, %v1712
      %v2443 = vadd.f32 %v2392, %v1712
      %v2444 = vadd.f32 %v2393, %v1712
      %v2445 = vadd.f32 %v2394, %v1712
      %v2446 = vadd.f32 %v2395, %v1712
      %v2447 = vadd.f32 %v2396, %v1712
      %v2448 = vadd.f32 %v2397, %v1712
      %v2449 = vadd.f32 %v2398, %v1712
      %v2450 = vadd.f32 %v2434, %v2418
      %v2451 = vadd.f32 %v2435, %v2419
      %v2452 = vadd.f32 %v2436, %v2420
      %v2453 = vadd.f32 %v2437, %v2421
      %v2454 = vadd.f32 %v2438, %v2422
      %v2455 = vadd.f32 %v2439, %v2423
      %v2456 = vadd.f32 %v2440, %v2424
      %v2457 = vadd.f32 %v2441, %v2425
      %v2458 = vadd.f32 %v2442, %v2426
      %v2459 = vadd.f32 %v2443, %v2427
      %v2460 = vadd.f32 %v2444, %v2428
      %v2461 = vadd.f32 %v2445, %v2429
      %v2462 = vadd.f32 %v2446, %v2430
      %v2463 = vadd.f32 %v2447, %v2431
      %v2464 = vadd.f32 %v2448, %v2432
      %v2465 = vadd.f32 %v2449, %v2433
      %v2466 = vmax.f32 %v2450, 0.0
      %v2467 = vmax.f32 %v2451, 0.0
      %v2468 = vmax.f32 %v2452, 0.0
      %v2469 = vmax.f32 %v2453, 0.0
      %v2470 = vmax.f32 %v2454, 0.0
      %v2471 = vmax.f32 %v2455, 0.0
      %v2472 = vmax.f32 %v2456, 0.0
      %v2473 = vmax.f32 %v2457, 0.0
      %v2474 = vmax.f32 %v2458, 0.0
      %v2475 = vmax.f32 %v2459, 0.0
      %v2476 = vmax.f32 %v2460, 0.0
      %v2477 = vmax.f32 %v2461, 0.0
      %v2478 = vmax.f32 %v2462, 0.0
      %v2479 = vmax.f32 %v2463, 0.0
      %v2480 = vmax.f32 %v2464, 0.0
      %v2481 = vmax.f32 %v2465, 0.0
      %v2482 = vpack.c.bf16 %v2467, %v2466
      %v2483 = vpack.c.bf16 %v2469, %v2468
      %v2484 = vpack.c.bf16 %v2471, %v2470
      %v2485 = vpack.c.bf16 %v2473, %v2472
      %v2486 = vpack.c.bf16 %v2475, %v2474
      %v2487 = vpack.c.bf16 %v2477, %v2476
      %v2488 = vpack.c.bf16 %v2479, %v2478
      %v2489 = vpack.c.bf16 %v2481, %v2480
      %v2498 = vunpack.c.l.b16 %v2482
      %v2499 = vunpack.c.h.b16 %v2482
      %v2500 = vunpack.c.l.b16 %v2483
      %v2501 = vunpack.c.h.b16 %v2483
      %v2502 = vunpack.c.l.b16 %v2484
      %v2503 = vunpack.c.h.b16 %v2484
      %v2504 = vunpack.c.l.b16 %v2485
      %v2505 = vunpack.c.h.b16 %v2485
      %v2506 = vunpack.c.l.b16 %v2486
      %v2507 = vunpack.c.h.b16 %v2486
      %v2508 = vunpack.c.l.b16 %v2487
      %v2509 = vunpack.c.h.b16 %v2487
      %v2510 = vunpack.c.l.b16 %v2488
      %v2511 = vunpack.c.h.b16 %v2488
      %v2512 = vunpack.c.l.b16 %v2489
      %v2513 = vunpack.c.h.b16 %v2489
      %v2514 = vpack.c.b16 %v2498, %v2498
      %v2515 = vpack.c.b16 %v2499, %v2499
      %v2516 = vpack.c.b16 %v2500, %v2500
      %v2517 = vpack.c.b16 %v2501, %v2501
      %v2518 = vpack.c.b16 %v2502, %v2502
      %v2519 = vpack.c.b16 %v2503, %v2503
      %v2520 = vpack.c.b16 %v2504, %v2504
      %v2521 = vpack.c.b16 %v2505, %v2505
      %v2522 = vpack.c.b16 %v2506, %v2506
      %v2523 = vpack.c.b16 %v2507, %v2507
      %v2524 = vpack.c.b16 %v2508, %v2508
      %v2525 = vpack.c.b16 %v2509, %v2509
      %v2526 = vpack.c.b16 %v2510, %v2510
      %v2527 = vpack.c.b16 %v2511, %v2511
      %v2528 = vpack.c.b16 %v2512, %v2512
      %v2529 = vpack.c.b16 %v2513, %v2513
      %s2546 = smul.addr %s2399, 4
      %s2547 = scalar_lea.vmem %s224, %s2546
      %2548 = vst.msk [vmem:[%s2547] sm:$0xf] %vm1828, %v2514
      %2549 = vst.msk [vmem:[%s2547 + $0x4] sm:$0xf] %vm1828, %v2515
      %2550 = vst.msk [vmem:[%s2547 + $0x8] sm:$0xf] %vm1828, %v2516
      %2551 = vst.msk [vmem:[%s2547 + $0xc] sm:$0xf] %vm1828, %v2517
      %2552 = vst.msk [vmem:[%s2547 + $0x10] sm:$0xf] %vm1828, %v2518
      %2553 = vst.msk [vmem:[%s2547 + $0x14] sm:$0xf] %vm1828, %v2519
      %2554 = vst.msk [vmem:[%s2547 + $0x18] sm:$0xf] %vm1828, %v2520
      %2555 = vst.msk [vmem:[%s2547 + $0x1c] sm:$0xf] %vm1828, %v2521
      %2556 = vst.msk [vmem:[%s2547 + $0x20] sm:$0xf] %vm1828, %v2522
      %2557 = vst.msk [vmem:[%s2547 + $0x24] sm:$0xf] %vm1828, %v2523
      %2558 = vst.msk [vmem:[%s2547 + $0x28] sm:$0xf] %vm1828, %v2524
      %2559 = vst.msk [vmem:[%s2547 + $0x2c] sm:$0xf] %vm1828, %v2525
      %2560 = vst.msk [vmem:[%s2547 + $0x30] sm:$0xf] %vm1828, %v2526
      %2561 = vst.msk [vmem:[%s2547 + $0x34] sm:$0xf] %vm1828, %v2527
      %2562 = vst.msk [vmem:[%s2547 + $0x38] sm:$0xf] %vm1828, %v2528
      %2563 = vst.msk [vmem:[%s2547 + $0x3c] sm:$0xf] %vm1828, %v2529
      %p2564 = scmp.lt.s32.totalorder %s16, 1
      %s2565 = scalar_select %p2564, %s16, 1
      %s2566 = smul.addr %s2565, 32
      %s2567 = smul.addr %s2566, 4
      %s2568 = scalar_lea.vmem %s5, %s2567
      // Predicated region
      $region41: #{basic_block_pallas.1} parent=39 // pred_check
        %p2569 = pneg %p144
      $region42: #{basic_block_pallas.1} parent=39 // pred_check_branch
        %2571 = sbr.rel (%p2569) target = $region44
      $region43: #{basic_block_pallas.1} parent=39 // pred_region
        _
      $region44: #{basic_block_pallas.1} parent=39 // pred_fallthru
        _
    $region40: #{basic_block_pallas.1} parent=5 // pred_fallthru
      _
    %p2572 = scmp.le.s32.totalorder 2, %s11
    // Predicated region
    $region45: #{basic_block_pallas.1} parent=5 // pred_check
      %p2573 = pneg %p2572
    $region46: #{basic_block_pallas.1} parent=5 // pred_check_branch
      %2575 = sbr.rel (%p2573) target = $region48
    $region47: #{basic_block_pallas.1} parent=5 // pred_region
      %s2576 = ssub.s32 %s11, 2
      // Predicated region
      $region49: #{basic_block_pallas.1} parent=47 // pred_check
        %p2577 = pneg %p150
      $region50: #{basic_block_pallas.1} parent=47 // pred_check_branch
        %2579 = sbr.rel (%p2577) target = $region52
      $region51: #{basic_block_pallas.1} parent=47 // pred_region
        %p2580 = scmp.lt.s32.totalorder %s17, 1
        %s2581 = scalar_select %p2580, %s17, 1
        %s2582 = smul.addr %s2581, 32
        %s2583 = smul.addr %s2582, 4
        %s2584 = scalar_lea.vmem %s5, %s2583
      $region52: #{basic_block_pallas.1} parent=47 // pred_fallthru
        _
    $region48: #{basic_block_pallas.1} parent=5 // pred_fallthru
      _
  $region6: #{basic_block_pallas.1} parent=0 // loop_footer
    %s15 = sadd.s32 1, %s11
  $region7: #{basic_block_pallas.1} parent=0 // loop_footer_branch
    %10 = sbr.rel target = $region3
  $region8: #{basic_block_pallas.1} parent=0 // loop_exit
    _

</llo_original>
